<compile_context>
chip_gen: v6e
topology: v6e:2x2x1
jax: 0.10.0
libtpu: 0.0.40
codegen_flags: <defaults>
</compile_context>

<pallas_src>
import jax
import jax.numpy as jnp
from jax.experimental import pallas as pl
from jax.experimental.pallas import tpu as pltpu

LANE = 128          # TPU lane width
_EPS = 1e-5         # nn.BatchNorm2d default eps
_NEG_SLOPE = 0.1    # LeakyReLU negative slope


def _round_up(x, m):
    return (x + m - 1) // m * m


def _pick_row_tile(H, W):
    """Row-tile height: keep >= 2 tiles when possible, aim for a matmul M dim
    (TH*W) of a few hundred rows to amortize per-grid-step overhead / feed the MXU."""
    th = H
    for cand in (8, 16, 32, 64):
        if H % cand == 0 and 2 * cand <= H:
            th = cand
            if cand * W >= 512:
                break
    return th


def _conv3x3_stats_kernel(xa_ref, xb_ref, w_ref, conv_ref, stats_ref):
    """Pass 1, one (batch, row-tile) grid cell.

    xa_ref   : (TH, W+2, Ci)  bf16  zero-padded input rows [r0, r0+TH)
    xb_ref   : (2,  W+2, Ci)  bf16  bottom-halo rows       [r0+TH, r0+TH+2)
    w_ref    : (9*Ci, Co)     bf16  conv taps, (ky, kx, cin)-major, channel padded
    conv_ref : (TH*W, Co)     f32   raw conv output tile (pre-BN), lane-dense
    stats_ref: (2, Co)        f32   per-channel partial [sum, sum_of_squares]
    """
    TH, Wp, Ci = xa_ref.shape
    W = Wp - 2

    # Row tile plus its 2 extra halo rows -> (TH+2, W+2, Ci).
    xp = jnp.concatenate([xa_ref[...], xb_ref[...]], axis=0)

    # im2col: the 9 shifted 3x3 windows concatenated along the channel (lane) axis.
    # Ci is padded to a multiple of 128, so every piece is lane-tile aligned.
    cols = [xp[dy:dy + TH, dx:dx + W, :] for dy in range(3) for dx in range(3)]
    patches = jnp.concatenate(cols, axis=-1)          # (TH, W, 9*Ci)  bf16
    patches = patches.reshape(TH * W, 9 * Ci)         # merge leading dims only

    # Single MXU matmul (bf16 operands, f32 accumulation) instead of nine K=Cin dots.
    acc = jnp.dot(patches, w_ref[...], preferred_element_type=jnp.float32)

    conv_ref[...] = acc                               # (TH*W, Co) f32, unmasked stores

    # Partial BatchNorm statistics for this tile; reduced across tiles outside.
    s1 = jnp.sum(acc, axis=0, keepdims=True)          # (1, Co)
    s2 = jnp.sum(acc * acc, axis=0, keepdims=True)    # (1, Co)
    stats_ref[...] = jnp.concatenate([s1, s2], axis=0)


def _bn_lrelu_kernel(conv_ref, scale_ref, shift_ref, out_ref):
    """Pass 2: BatchNorm folded into a single multiply-add, then LeakyReLU(0.1)."""
    y = conv_ref[...] * scale_ref[...] + shift_ref[...]
    out_ref[...] = jnp.where(y > 0, y, _NEG_SLOPE * y)


def _conv_bn_lrelu_layer(x, w_hwio, gamma, beta):
    """One Conv3x3(stride 1, pad 1, no bias) + BatchNorm2d(batch stats) + LeakyReLU(0.1).

    x       : (N, H, W, Ci) channel-padded NHWC activations (Ci >= true Cin,
              extra channels are zero, Ci is a multiple of 128).
    w_hwio  : (3, 3, Cin, Cout) unpadded conv weights (HWIO).
    gamma, beta : (Cout,) BN affine parameters.
    Returns (N, H, W, Co) with Co = round_up(Cout, 128); channels >= Cout are zero.
    """
    N, H, W, Ci = x.shape
    _, _, Cin, Cout = w_hwio.shape
    Co = _round_up(Cout, LANE)
    assert H % 2 == 0, "row tiling assumes an even image height"
    TH = _pick_row_tile(H, W)
    nH = H // TH
    Wp = W + 2
    K = 9 * Ci

    # Zero-pad weights up to the padded channel counts and flatten the 9 taps into K.
    w_p = jnp.pad(w_hwio, ((0, 0), (0, 0), (0, Ci - Cin), (0, Co - Cout)))
    w_p = w_p.reshape(K, Co).astype(jnp.bfloat16)
    g_p = jnp.pad(gamma, (0, Co - Cout))              # padded channels: gamma = 0
    b_p = jnp.pad(beta, (0, Co - Cout))

    # 1-pixel spatial zero halo; bf16 activations halve HBM/VMEM traffic (MXU accumulates f32).
    xpad = jnp.pad(x.astype(jnp.bfloat16), ((0, 0), (1, 1), (1, 1), (0, 0)))

    # ---- pass 1: conv + partial BN stats, grid over (batch, row-tile) ----
    conv_flat, stats = pl.pallas_call(
        _conv3x3_stats_kernel,
        grid=(N, nH),
        in_specs=[
            # row tile [r0, r0+TH)
            pl.BlockSpec((None, TH, Wp, Ci), lambda n, ih: (n, ih, 0, 0)),
            # bottom halo rows [r0+TH, r0+TH+2)  (same array, different window)
            pl.BlockSpec((None, 2, Wp, Ci),
                         lambda n, ih: (n, (ih + 1) * (TH // 2), 0, 0)),
            # full weight matrix, resident across the grid
            pl.BlockSpec((K, Co), lambda n, ih: (0, 0)),
        ],
        out_specs=(
            pl.BlockSpec((None, TH * W, Co), lambda n, ih: (n, ih, 0)),
            pl.BlockSpec((None, None, 2, Co), lambda n, ih: (n, ih, 0, 0)),
        ),
        out_shape=(
            jax.ShapeDtypeStruct((N, H * W, Co), jnp.float32),   # raw conv output
            jax.ShapeDtypeStruct((N, nH, 2, Co), jnp.float32),   # per-tile [sum, sumsq]
        ),
        compiler_params=pltpu.CompilerParams(
            dimension_semantics=("parallel", "parallel")),
    )(xpad, xpad, w_p)

    # ---- finalize BN: fold mean/var/gamma/beta into one scale/shift (O(C) work) ----
    count = N * H * W
    sums = jnp.sum(stats, axis=(0, 1))                           # (2, Co) f32
    mean = sums[0] / count
    var = jnp.maximum(sums[1] / count - mean * mean, 0.0)        # biased variance
    scale = g_p * jax.lax.rsqrt(var + _EPS)
    shift = b_p - mean * scale
    scale = scale.reshape(1, Co).astype(jnp.float32)
    shift = shift.reshape(1, Co).astype(jnp.float32)

    # ---- pass 2: normalize + LeakyReLU, same grid, both axes parallel ----
    out_flat = pl.pallas_call(
        _bn_lrelu_kernel,
        grid=(N, nH),
        in_specs=[
            pl.BlockSpec((None, TH * W, Co), lambda n, ih: (n, ih, 0)),
            pl.BlockSpec((1, Co), lambda n, ih: (0, 0)),
            pl.BlockSpec((1, Co), lambda n, ih: (0, 0)),
        ],
        out_specs=pl.BlockSpec((None, TH * W, Co), lambda n, ih: (n, ih, 0)),
        out_shape=jax.ShapeDtypeStruct((N, H * W, Co), jnp.float32),
        compiler_params=pltpu.CompilerParams(
            dimension_semantics=("parallel", "parallel")),
    )(conv_flat, scale, shift)

    return out_flat.reshape(N, H, W, Co)


def init_double_conv_params(key, in_channels, out_channels):
    """Parameters matching the PyTorch module shapes: Conv2d (Cout, Cin, 3, 3), no bias;
    BatchNorm2d gamma = 1, beta = 0 (fresh-module defaults)."""
    k1, k2 = jax.random.split(key)
    w1 = 0.1 * jax.random.normal(k1, (out_channels, in_channels, 3, 3), jnp.float32)
    w2 = 0.1 * jax.random.normal(k2, (out_channels, out_channels, 3, 3), jnp.float32)
    return dict(
        w1=w1, g1=jnp.ones((out_channels,), jnp.float32),
        b1=jnp.zeros((out_channels,), jnp.float32),
        w2=w2, g2=jnp.ones((out_channels,), jnp.float32),
        b2=jnp.zeros((out_channels,), jnp.float32))


@jax.jit
def double_conv_forward(x_nchw, params):
    """DoubleConv.forward with the PyTorch NCHW input/output convention."""
    N, Cin, H, W = x_nchw.shape
    Cout = params["w1"].shape[0]
    x = jnp.transpose(x_nchw, (0, 2, 3, 1))                       # NCHW -> NHWC
    x = jnp.pad(x, ((0, 0), (0, 0), (0, 0), (0, _round_up(Cin, LANE) - Cin)))
    w1 = jnp.transpose(params["w1"], (2, 3, 1, 0))                # OIHW -> HWIO
    w2 = jnp.transpose(params["w2"], (2, 3, 1, 0))
    h = _conv_bn_lrelu_layer(x, w1, params["g1"], params["b1"])   # channel-padded
    h = _conv_bn_lrelu_layer(h, w2, params["g2"], params["b2"])   # channel-padded
    h = h[..., :Cout]                                             # drop channel padding
    return jnp.transpose(h, (0, 3, 1, 2))                         # NHWC -> NCHW


def _reference_forward(x_nchw, params):
    """Pure-JAX reference: lax.conv with bf16 operands / f32 accumulation (matching the
    kernel's MXU precision) + training-mode BatchNorm (batch stats, biased variance)
    + LeakyReLU(0.1)."""
    def layer(x, w, g, b):
        y = jax.lax.conv_general_dilated(
            x.astype(jnp.bfloat16), w.astype(jnp.bfloat16),
            window_strides=(1, 1), padding="SAME",
            dimension_numbers=("NCHW", "OIHW", "NCHW"),
            preferred_element_type=jnp.float32)
        mean = jnp.mean(y, axis=(0, 2, 3), keepdims=True)
        var = jnp.mean((y - mean) ** 2, axis=(0, 2, 3), keepdims=True)
        y = (y - mean) * jax.lax.rsqrt(var + _EPS)
        y = y * g.reshape(1, -1, 1, 1) + b.reshape(1, -1, 1, 1)
        return jnp.where(y > 0, y, _NEG_SLOPE * y)

    h = layer(x_nchw, params["w1"], params["g1"], params["b1"])
    return layer(h, params["w2"], params["g2"], params["b2"])


if __name__ == "__main__":
    key = jax.random.PRNGKey(0)
    kx, kp = jax.random.split(key)

    N, Cin, Cout, HW = 2, 4, 8, 16
    x = jax.random.normal(kx, (N, Cin, HW, HW), jnp.float32)      # NCHW like PyTorch
    params = init_double_conv_params(kp, Cin, Cout)

    out = jax.block_until_ready(double_conv_forward(x, params))
    assert out.shape == (N, Cout, HW, HW), out.shape

    ref = _reference_forward(x, params)
    max_err = float(jnp.max(jnp.abs(out - ref)))
    assert max_err < 2e-2, max_err

    print("KERNEL_OK")
</pallas_src>

<mosaic_0001>
module attributes {stable_mosaic.version = 11 : i64} {
  func.func @_conv3x3_stats_kernel(%arg0: i32, %arg1: i32, %arg2: memref<1x8x18x128xbf16, #tpu.memory_space<vmem>>, %arg3: memref<1x2x18x128xbf16, #tpu.memory_space<vmem>>, %arg4: memref<1152x128xbf16, #tpu.memory_space<vmem>>, %arg5: memref<1x128x128xf32, #tpu.memory_space<vmem>>, %arg6: memref<1x1x2x128xf32, #tpu.memory_space<vmem>>) attributes {dimension_semantics = [#tpu.dimension_semantics<parallel>, #tpu.dimension_semantics<parallel>], iteration_bounds = array<i64: 2, 2>, scalar_prefetch = 0 : i64, scratch_operands = 0 : i64, tpu.core_type = #tpu.core_type<tc>, window_params = [{transform_indices = @transform_0, window_bounds = array<i64: 1, 8, 18, 128>}, {transform_indices = @transform_1, window_bounds = array<i64: 1, 2, 18, 128>}, {pipeline_mode = #tpu.pipeline_mode<synchronous>, transform_indices = @transform_2, window_bounds = array<i64: 1152, 128>}, {transform_indices = @transform_3, window_bounds = array<i64: 1, 128, 128>}, {transform_indices = @transform_4, window_bounds = array<i64: 1, 1, 2, 128>}]} {
    %c0 = arith.constant 0 : index
    %c0_0 = arith.constant 0 : index
    %c0_1 = arith.constant 0 : index
    %c0_2 = arith.constant 0 : index
    %0 = vector.load %arg2[%c0, %c0_0, %c0_1, %c0_2] : memref<1x8x18x128xbf16, #tpu.memory_space<vmem>>, vector<1x8x18x128xbf16>
    %1 = vector.shape_cast %0 : vector<1x8x18x128xbf16> to vector<8x18x128xbf16>
    %c0_3 = arith.constant 0 : index
    %c0_4 = arith.constant 0 : index
    %c0_5 = arith.constant 0 : index
    %c0_6 = arith.constant 0 : index
    %2 = vector.load %arg3[%c0_3, %c0_4, %c0_5, %c0_6] : memref<1x2x18x128xbf16, #tpu.memory_space<vmem>>, vector<1x2x18x128xbf16>
    %3 = vector.shape_cast %2 : vector<1x2x18x128xbf16> to vector<2x18x128xbf16>
    %4 = tpu.concatenate %1, %3 in 0 : vector<8x18x128xbf16>, vector<2x18x128xbf16> -> vector<10x18x128xbf16>
    %5 = vector.extract_strided_slice %4 {offsets = [0, 0, 0], sizes = [8, 16, 128], strides = [1, 1, 1]} : vector<10x18x128xbf16> to vector<8x16x128xbf16>
    %6 = vector.extract_strided_slice %4 {offsets = [0, 1, 0], sizes = [8, 16, 128], strides = [1, 1, 1]} : vector<10x18x128xbf16> to vector<8x16x128xbf16>
    %7 = vector.extract_strided_slice %4 {offsets = [0, 2, 0], sizes = [8, 16, 128], strides = [1, 1, 1]} : vector<10x18x128xbf16> to vector<8x16x128xbf16>
    %8 = vector.extract_strided_slice %4 {offsets = [1, 0, 0], sizes = [8, 16, 128], strides = [1, 1, 1]} : vector<10x18x128xbf16> to vector<8x16x128xbf16>
    %9 = vector.extract_strided_slice %4 {offsets = [1, 1, 0], sizes = [8, 16, 128], strides = [1, 1, 1]} : vector<10x18x128xbf16> to vector<8x16x128xbf16>
    %10 = vector.extract_strided_slice %4 {offsets = [1, 2, 0], sizes = [8, 16, 128], strides = [1, 1, 1]} : vector<10x18x128xbf16> to vector<8x16x128xbf16>
    %11 = vector.extract_strided_slice %4 {offsets = [2, 0, 0], sizes = [8, 16, 128], strides = [1, 1, 1]} : vector<10x18x128xbf16> to vector<8x16x128xbf16>
    %12 = vector.extract_strided_slice %4 {offsets = [2, 1, 0], sizes = [8, 16, 128], strides = [1, 1, 1]} : vector<10x18x128xbf16> to vector<8x16x128xbf16>
    %13 = vector.extract_strided_slice %4 {offsets = [2, 2, 0], sizes = [8, 16, 128], strides = [1, 1, 1]} : vector<10x18x128xbf16> to vector<8x16x128xbf16>
    %14 = tpu.concatenate %5, %6, %7, %8, %9, %10, %11, %12, %13 in 2 : vector<8x16x128xbf16>, vector<8x16x128xbf16>, vector<8x16x128xbf16>, vector<8x16x128xbf16>, vector<8x16x128xbf16>, vector<8x16x128xbf16>, vector<8x16x128xbf16>, vector<8x16x128xbf16>, vector<8x16x128xbf16> -> vector<8x16x1152xbf16>
    %15 = vector.shape_cast %14 : vector<8x16x1152xbf16> to vector<128x1152xbf16>
    %c0_7 = arith.constant 0 : index
    %c0_8 = arith.constant 0 : index
    %16 = vector.load %arg4[%c0_7, %c0_8] : memref<1152x128xbf16, #tpu.memory_space<vmem>>, vector<1152x128xbf16>
    %cst = arith.constant dense<0.000000e+00> : vector<128x128xf32>
    %17 = tpu.matmul %15, %16, %cst {dimension_numbers = #tpu.dot_dimension_numbers<[1], [0], [0], [1], [0, 0, 1, 1], [], []>} : vector<128x1152xbf16>, vector<1152x128xbf16>, vector<128x128xf32> -> vector<128x128xf32>
    %c0_9 = arith.constant 0 : index
    %c0_10 = arith.constant 0 : index
    %c0_11 = arith.constant 0 : index
    %18 = vector.load %arg5[%c0_9, %c0_10, %c0_11] : memref<1x128x128xf32, #tpu.memory_space<vmem>>, vector<1x128x128xf32>
    %19 = vector.shape_cast %18 : vector<1x128x128xf32> to vector<128x128xf32>
    %20 = vector.shape_cast %17 : vector<128x128xf32> to vector<1x128x128xf32>
    tpu.vector_store %arg5[%c0_9, %c0_10, %c0_11], %20 {strides = array<i32>} : memref<1x128x128xf32, #tpu.memory_space<vmem>>, vector<1x128x128xf32>,
    %cst_12 = arith.constant dense<0.000000e+00> : vector<128xf32>
    %21 = vector.multi_reduction <add>, %17, %cst_12 [0] : vector<128x128xf32> to vector<128xf32>
    %22 = vector.shape_cast %21 : vector<128xf32> to vector<1x128xf32>
    %23 = arith.mulf %17, %17 : vector<128x128xf32>
    %cst_13 = arith.constant dense<0.000000e+00> : vector<128xf32>
    %24 = vector.multi_reduction <add>, %23, %cst_13 [0] : vector<128x128xf32> to vector<128xf32>
    %25 = vector.shape_cast %24 : vector<128xf32> to vector<1x128xf32>
    %26 = tpu.concatenate %22, %25 in 0 : vector<1x128xf32>, vector<1x128xf32> -> vector<2x128xf32>
    %c0_14 = arith.constant 0 : index
    %c0_15 = arith.constant 0 : index
    %c0_16 = arith.constant 0 : index
    %c0_17 = arith.constant 0 : index
    %27 = vector.load %arg6[%c0_14, %c0_15, %c0_16, %c0_17] : memref<1x1x2x128xf32, #tpu.memory_space<vmem>>, vector<1x1x2x128xf32>
    %28 = vector.shape_cast %27 : vector<1x1x2x128xf32> to vector<2x128xf32>
    %29 = vector.shape_cast %26 : vector<2x128xf32> to vector<1x1x2x128xf32>
    tpu.vector_store %arg6[%c0_14, %c0_15, %c0_16, %c0_17], %29 {strides = array<i32>} : memref<1x1x2x128xf32, #tpu.memory_space<vmem>>, vector<1x1x2x128xf32>,
    return
  }
  func.func @transform_0(%arg0: i32, %arg1: i32) -> (i32, i32, i32, i32) {
    %c0_i32 = arith.constant 0 : i32
    %c0_i32_0 = arith.constant 0 : i32
    %c0_i32_1 = arith.constant 0 : i32
    return %arg0, %arg1, %c0_i32, %c0_i32_0 : i32, i32, i32, i32
  }
  func.func @transform_1(%arg0: i32, %arg1: i32) -> (i32, i32, i32, i32) {
    %c1_i32 = arith.constant 1 : i32
    %0 = arith.addi %arg1, %c1_i32 : i32
    %c4_i32 = arith.constant 4 : i32
    %1 = arith.muli %0, %c4_i32 : i32
    %c0_i32 = arith.constant 0 : i32
    %c0_i32_0 = arith.constant 0 : i32
    %c0_i32_1 = arith.constant 0 : i32
    return %arg0, %1, %c0_i32, %c0_i32_0 : i32, i32, i32, i32
  }
  func.func @transform_2(%arg0: i32, %arg1: i32) -> (i32, i32) {
    %c0_i32 = arith.constant 0 : i32
    %c0_i32_0 = arith.constant 0 : i32
    %c0_i32_1 = arith.constant 0 : i32
    return %c0_i32, %c0_i32_0 : i32, i32
  }
  func.func @transform_3(%arg0: i32, %arg1: i32) -> (i32, i32, i32) {
    %c0_i32 = arith.constant 0 : i32
    %c0_i32_0 = arith.constant 0 : i32
    return %arg0, %arg1, %c0_i32 : i32, i32, i32
  }
  func.func @transform_4(%arg0: i32, %arg1: i32) -> (i32, i32, i32, i32) {
    %c0_i32 = arith.constant 0 : i32
    %c0_i32_0 = arith.constant 0 : i32
    %c0_i32_1 = arith.constant 0 : i32
    return %arg0, %arg1, %c0_i32, %c0_i32_0 : i32, i32, i32, i32
  }
}

module attributes {stable_mosaic.version = 11 : i64} {
  func.func @_bn_lrelu_kernel(%arg0: i32, %arg1: i32, %arg2: memref<1x128x128xf32, #tpu.memory_space<vmem>>, %arg3: memref<1x128xf32, #tpu.memory_space<vmem>>, %arg4: memref<1x128xf32, #tpu.memory_space<vmem>>, %arg5: memref<1x128x128xf32, #tpu.memory_space<vmem>>) attributes {dimension_semantics = [#tpu.dimension_semantics<parallel>, #tpu.dimension_semantics<parallel>], iteration_bounds = array<i64: 2, 2>, scalar_prefetch = 0 : i64, scratch_operands = 0 : i64, tpu.core_type = #tpu.core_type<tc>, window_params = [{transform_indices = @transform_0, window_bounds = array<i64: 1, 128, 128>}, {pipeline_mode = #tpu.pipeline_mode<synchronous>, transform_indices = @transform_1, window_bounds = array<i64: 1, 128>}, {pipeline_mode = #tpu.pipeline_mode<synchronous>, transform_indices = @transform_2, window_bounds = array<i64: 1, 128>}, {transform_indices = @transform_3, window_bounds = array<i64: 1, 128, 128>}]} {
    %c0 = arith.constant 0 : index
    %c0_0 = arith.constant 0 : index
    %c0_1 = arith.constant 0 : index
    %0 = vector.load %arg2[%c0, %c0_0, %c0_1] : memref<1x128x128xf32, #tpu.memory_space<vmem>>, vector<1x128x128xf32>
    %1 = vector.shape_cast %0 : vector<1x128x128xf32> to vector<128x128xf32>
    %c0_2 = arith.constant 0 : index
    %c0_3 = arith.constant 0 : index
    %2 = vector.load %arg3[%c0_2, %c0_3] : memref<1x128xf32, #tpu.memory_space<vmem>>, vector<1x128xf32>
    %3 = vector.broadcast %2 : vector<1x128xf32> to vector<128x128xf32>
    %4 = arith.mulf %1, %3 : vector<128x128xf32>
    %c0_4 = arith.constant 0 : index
    %c0_5 = arith.constant 0 : index
    %5 = vector.load %arg4[%c0_4, %c0_5] : memref<1x128xf32, #tpu.memory_space<vmem>>, vector<1x128xf32>
    %6 = vector.broadcast %5 : vector<1x128xf32> to vector<128x128xf32>
    %7 = arith.addf %4, %6 : vector<128x128xf32>
    %cst = arith.constant 0.000000e+00 : f32
    %8 = vector.broadcast %cst : f32 to vector<128x128xf32>
    %9 = arith.cmpf ogt, %7, %8 : vector<128x128xf32>
    %cst_6 = arith.constant 1.000000e-01 : f32
    %10 = vector.broadcast %cst_6 : f32 to vector<128x128xf32>
    %11 = arith.mulf %10, %7 : vector<128x128xf32>
    %12 = arith.select %9, %7, %11 : vector<128x128xi1>, vector<128x128xf32>
    %c0_7 = arith.constant 0 : index
    %c0_8 = arith.constant 0 : index
    %c0_9 = arith.constant 0 : index
    %13 = vector.load %arg5[%c0_7, %c0_8, %c0_9] : memref<1x128x128xf32, #tpu.memory_space<vmem>>, vector<1x128x128xf32>
    %14 = vector.shape_cast %13 : vector<1x128x128xf32> to vector<128x128xf32>
    %15 = vector.shape_cast %12 : vector<128x128xf32> to vector<1x128x128xf32>
    tpu.vector_store %arg5[%c0_7, %c0_8, %c0_9], %15 {strides = array<i32>} : memref<1x128x128xf32, #tpu.memory_space<vmem>>, vector<1x128x128xf32>,
    return
  }
  func.func @transform_0(%arg0: i32, %arg1: i32) -> (i32, i32, i32) {
    %c0_i32 = arith.constant 0 : i32
    %c0_i32_0 = arith.constant 0 : i32
    return %arg0, %arg1, %c0_i32 : i32, i32, i32
  }
  func.func @transform_1(%arg0: i32, %arg1: i32) -> (i32, i32) {
    %c0_i32 = arith.constant 0 : i32
    %c0_i32_0 = arith.constant 0 : i32
    %c0_i32_1 = arith.constant 0 : i32
    return %c0_i32, %c0_i32_0 : i32, i32
  }
  func.func @transform_2(%arg0: i32, %arg1: i32) -> (i32, i32) {
    %c0_i32 = arith.constant 0 : i32
    %c0_i32_0 = arith.constant 0 : i32
    %c0_i32_1 = arith.constant 0 : i32
    return %c0_i32, %c0_i32_0 : i32, i32
  }
  func.func @transform_3(%arg0: i32, %arg1: i32) -> (i32, i32, i32) {
    %c0_i32 = arith.constant 0 : i32
    %c0_i32_0 = arith.constant 0 : i32
    return %arg0, %arg1, %c0_i32 : i32, i32, i32
  }
}

</mosaic_0001>

<llo_original>
// kernel: double_conv_forward.5
$region0: #{double_conv_forward.5}
  #allocation0 [shape = 'u32[]', space=smem, size = 0x4, offset = 0x4, fixed_abs, tag = 'smem constant byte address 0x4 - core index']
  #allocation1 [shape = 'u32[144,128]{1,0:T(1,128)}', space=vmem, size = 0x12000, scoped, tag = 'internal scratch']
  %s0 = inlined_call_operand.vmem [shape: f32[2,256,128], index: 0, kind: input, shape index: {}]
  %s1 = inlined_call_operand.vmem [shape: f32[1,128], index: 1, kind: input, shape index: {}]
  %s2 = inlined_call_operand.vmem [shape: f32[1,128], index: 2, kind: input, shape index: {}]
  %s3 = inlined_call_operand.vmem [shape: f32[2,256,128], index: 3, kind: output, shape index: {}]
  %s4 = sld [smem:[#allocation0]]
  $region45: #{double_conv_forward.5} parent=0
    _
  %s6 = ssub.s32 1, %s4
  %s7 = scalar_select 0, %s6, %s4
  loop: start=0, step=1, limit=6
  $region2: #{double_conv_forward.5} parent=0 // loop_pre_header
    _
  $region3: #{double_conv_forward.5} parent=0 // loop_header
    %s9 = sphi 0, %s13
    %p10 = scmp.ge.s32.totalorder %s9, 6
    %s16 = sphi 0, %s28
    %s17 = sphi 0, %s24
    %s18 = sphi 0, %s16
    %s19 = sphi 0, %s17
    %s20 = sphi 0, %s18
    %s21 = sphi 0, %s19
    %s33 = sphi 0, %s35
    %s36 = sphi 0, %s33
    %s37 = sphi 0, %s36
    %s53 = sphi 0, %s37
    %s57 = sphi 0, %s57
    %s59 = sphi 0, %s57
    %s60 = sphi 0, %s59
    %s74 = sphi 0, %s60
    %s78 = sphi 0, %s78
    %s80 = sphi 0, %s78
    %s81 = sphi 0, %s80
    %s95 = sphi 0, %s81
    %s103 = sphi 0, %s105
    %s106 = sphi 0, %s103
    %s107 = sphi 0, %s106
    %s123 = sphi 0, %s107
  $region4: #{double_conv_forward.5} parent=0 // loop_header_branch
    %12 = sbr.rel (%p10) target = $region8
  $region5: #{double_conv_forward.5} parent=0 // loop_body
    %s14 = ssub.s32 %s9, 1
    %s15 = ssub.s32 %s9, 2
    %s22 = sadd.s32 1, %s17
    %p23 = scmp.ge.s32.totalorder %s22, 2
    %s24 = scalar_select %p23, 0, %s22
    %s25 = sadd.s32 1, %s16
    %s26 = scalar_select %p23, %s25, %s16
    %p27 = scmp.ge.s32.totalorder %s26, 2
    %s28 = scalar_select %p27, 0, %s26
    %s29 = ssub.s32 %s16, %s28
    %s30 = ssub.s32 %s17, %s24
    %s31 = sor.u32 %s29, %s30
    %p32 = scmp.eq.s32.totalorder %s31, 0
    %s34 = sadd.s32 %s33, 1
    %s35 = scalar_select %p32, %s33, %s34
    %p38 = pneg %p32
    %p39 = scmp.eq.s32.totalorder %s9, 3
    %p40 = por %p38, %p39
    %p41 = scmp.ne.s32.totalorder %s33, %s36
    %p42 = scmp.eq.s32.totalorder %s9, 0
    %p43 = por %p41, %p42
    %p44 = scmp.ne.s32.totalorder %s33, %s36
    %p45 = scmp.eq.s32.totalorder %s14, 3
    %p46 = por %p44, %p45
    %p47 = scmp.ne.s32.totalorder %s36, %s37
    %p48 = scmp.eq.s32.totalorder %s14, 0
    %p49 = por %p47, %p48
    %p50 = scmp.ne.s32.totalorder %s36, %s37
    %p51 = scmp.eq.s32.totalorder %s15, 3
    %p52 = por %p50, %p51
    %p54 = scmp.ne.s32.totalorder %s37, %s53
    %p55 = scmp.eq.s32.totalorder %s15, 0
    %p56 = por %p54, %p55
    %s58 = sadd.s32 %s57, 1
    %p61 = scmp.eq.s32.totalorder %s9, 3
    %p62 = scmp.ne.s32.totalorder %s57, %s59
    %p63 = scmp.eq.s32.totalorder %s9, 0
    %p64 = por %p62, %p63
    %p65 = scmp.ne.s32.totalorder %s57, %s59
    %p66 = scmp.eq.s32.totalorder %s14, 3
    %p67 = por %p65, %p66
    %p68 = scmp.ne.s32.totalorder %s59, %s60
    %p69 = scmp.eq.s32.totalorder %s14, 0
    %p70 = por %p68, %p69
    %p71 = scmp.ne.s32.totalorder %s59, %s60
    %p72 = scmp.eq.s32.totalorder %s15, 3
    %p73 = por %p71, %p72
    %p75 = scmp.ne.s32.totalorder %s60, %s74
    %p76 = scmp.eq.s32.totalorder %s15, 0
    %p77 = por %p75, %p76
    %s79 = sadd.s32 %s78, 1
    %p82 = scmp.eq.s32.totalorder %s9, 3
    %p83 = scmp.ne.s32.totalorder %s78, %s80
    %p84 = scmp.eq.s32.totalorder %s9, 0
    %p85 = por %p83, %p84
    %p86 = scmp.ne.s32.totalorder %s78, %s80
    %p87 = scmp.eq.s32.totalorder %s14, 3
    %p88 = por %p86, %p87
    %p89 = scmp.ne.s32.totalorder %s80, %s81
    %p90 = scmp.eq.s32.totalorder %s14, 0
    %p91 = por %p89, %p90
    %p92 = scmp.ne.s32.totalorder %s80, %s81
    %p93 = scmp.eq.s32.totalorder %s15, 3
    %p94 = por %p92, %p93
    %p96 = scmp.ne.s32.totalorder %s81, %s95
    %p97 = scmp.eq.s32.totalorder %s15, 0
    %p98 = por %p96, %p97
    %s99 = ssub.s32 %s16, %s28
    %s100 = ssub.s32 %s17, %s24
    %s101 = sor.u32 %s99, %s100
    %p102 = scmp.eq.s32.totalorder %s101, 0
    %s104 = sadd.s32 %s103, 1
    %s105 = scalar_select %p102, %s103, %s104
    %p108 = pneg %p102
    %p109 = scmp.eq.s32.totalorder %s9, 3
    %p110 = por %p108, %p109
    %p111 = scmp.ne.s32.totalorder %s103, %s106
    %p112 = scmp.eq.s32.totalorder %s9, 0
    %p113 = por %p111, %p112
    %p114 = scmp.ne.s32.totalorder %s103, %s106
    %p115 = scmp.eq.s32.totalorder %s14, 3
    %p116 = por %p114, %p115
    %p117 = scmp.ne.s32.totalorder %s106, %s107
    %p118 = scmp.eq.s32.totalorder %s14, 0
    %p119 = por %p117, %p118
    %p120 = scmp.ne.s32.totalorder %s106, %s107
    %p121 = scmp.eq.s32.totalorder %s15, 3
    %p122 = por %p120, %p121
    %p124 = scmp.ne.s32.totalorder %s107, %s123
    %p125 = scmp.eq.s32.totalorder %s15, 0
    %p126 = por %p124, %p125
    %p127 = scmp.le.s32.totalorder 1, %s9
    %p128 = scmp.lt.s32.totalorder %s9, 5
    %p129 = pnand %p127, %p128
    %p130 = pneg %p129
    // Predicated region
    $region9: #{double_conv_forward.5} parent=5 // pred_check
      _
    $region10: #{double_conv_forward.5} parent=5 // pred_check_branch
      %132 = sbr.rel (%p129) target = $region12
    $region11: #{double_conv_forward.5} parent=5 // pred_region
      %s133 = ssub.s32 %s9, 1
      // Predicated region
      $region13: #{double_conv_forward.5} parent=11 // pred_check
        %p134 = pneg %p70
      $region14: #{double_conv_forward.5} parent=11 // pred_check_branch
        %136 = sbr.rel (%p134) target = $region16
      $region15: #{double_conv_forward.5} parent=11 // pred_region
        _
      $region16: #{double_conv_forward.5} parent=11 // pred_fallthru
        _
      // Predicated region
      $region17: #{double_conv_forward.5} parent=11 // pred_check
        %p137 = pneg %p91
      $region18: #{double_conv_forward.5} parent=11 // pred_check_branch
        %139 = sbr.rel (%p137) target = $region20
      $region19: #{double_conv_forward.5} parent=11 // pred_region
        _
      $region20: #{double_conv_forward.5} parent=11 // pred_fallthru
        _
    $region12: #{double_conv_forward.5} parent=5 // pred_fallthru
      _
    %p140 = scmp.lt.s32.totalorder %s9, 4
    // Predicated region
    $region21: #{double_conv_forward.5} parent=5 // pred_check
      %p141 = pneg %p140
    $region22: #{double_conv_forward.5} parent=5 // pred_check_branch
      %143 = sbr.rel (%p141) target = $region24
    $region23: #{double_conv_forward.5} parent=5 // pred_region
      // Predicated region
      $region25: #{double_conv_forward.5} parent=23 // pred_check
        %p144 = pneg %p43
      $region26: #{double_conv_forward.5} parent=23 // pred_check_branch
        %146 = sbr.rel (%p144) target = $region28
      $region27: #{double_conv_forward.5} parent=23 // pred_region
        %s147 = smul.u32 16, %s17
        %p148 = scmp.lt.s32.totalorder %s16, 1
        %s149 = scalar_select %p148, %s16, 1
        %p150 = scmp.lt.s32.totalorder %s147, 31
        %s151 = scalar_select %p150, %s147, 31
        %s152 = smul.addr %s149, 32
        %s153 = sadd.s32 %s151, %s152
        %s154 = smul.addr %s153, 8
        %s155 = scalar_lea.vmem %s0, %s154
        %s156 = smul.u32 16, %s17
      $region28: #{double_conv_forward.5} parent=23 // pred_fallthru
        _
    $region24: #{double_conv_forward.5} parent=5 // pred_fallthru
      _
    %p157 = scmp.le.s32.totalorder 1, %s9
    %p158 = scmp.lt.s32.totalorder %s9, 5
    %p159 = pnand %p157, %p158
    %p160 = pneg %p159
    // Predicated region
    $region29: #{double_conv_forward.5} parent=5 // pred_check
      _
    $region30: #{double_conv_forward.5} parent=5 // pred_check_branch
      %162 = sbr.rel (%p159) target = $region32
    $region31: #{double_conv_forward.5} parent=5 // pred_region
      %s163 = ssub.s32 %s9, 1
      %s164 = smul.u32 16, %s19
      %p165 = scmp.lt.s32.totalorder %s18, 1
      %s166 = scalar_select %p165, %s18, 1
      %p167 = scmp.lt.s32.totalorder %s164, 31
      %s168 = scalar_select %p167, %s164, 31
      %s169 = smul.addr %s166, 32
      %s170 = sadd.s32 %s168, %s169
      %s171 = smul.addr %s170, 8
      %s172 = scalar_lea.vmem %s0, %s171
      %p173 = pneg %p49
      %p174 = pneg %p46
      %p175 = pneg %p70
      %p176 = pneg %p67
      %p177 = pneg %p91
      %p178 = pneg %p88
      %p179 = pneg %p119
      %p180 = pneg %p116
      %s181 = smul.u32 16, %s19
      %p182 = scmp.lt.s32.totalorder %s18, 1
      %s183 = scalar_select %p182, %s18, 1
      %p184 = scmp.lt.s32.totalorder %s181, 31
      %s185 = scalar_select %p184, %s181, 31
      %s186 = smul.addr %s183, 32
      %s187 = sadd.s32 %s185, %s186
      %s188 = smul.addr %s187, 8
      %s189 = scalar_lea.vmem %s3, %s188
      %s190 = smul.u32 16, %s19
      %p191 = scmp.lt.s32.totalorder %s18, 1
      %s192 = scalar_select %p191, %s18, 1
      %p193 = scmp.lt.s32.totalorder %s190, 31
      %s194 = scalar_select %p193, %s190, 31
      %s195 = smul.addr %s192, 32
      %s196 = sadd.s32 %s194, %s195
      %s197 = smul.addr %s196, 8
      %s198 = scalar_lea.vmem %s0, %s197
      %s199 = smul.u32 16, %s19
      %s200 = smul.u32 16, %s19
      %p201 = scmp.lt.s32.totalorder %s18, 1
      %s202 = scalar_select %p201, %s18, 1
      %p203 = scmp.lt.s32.totalorder %s200, 31
      %s204 = scalar_select %p203, %s200, 31
      %s205 = smul.addr %s202, 32
      %s206 = sadd.s32 %s204, %s205
      %s207 = smul.addr %s206, 8
      %s208 = scalar_lea.vmem %s3, %s207
      %s209 = smul.u32 16, %s19
      %v210 = vld [vmem:[%s198] sm:$0xff]
      %v211 = vld [vmem:[%s198 + $0x8] sm:$0xff]
      %v212 = vld [vmem:[%s198 + $0x10] sm:$0xff]
      %v213 = vld [vmem:[%s198 + $0x18] sm:$0xff]
      %v214 = vld [vmem:[%s198 + $0x20] sm:$0xff]
      %v215 = vld [vmem:[%s198 + $0x28] sm:$0xff]
      %v216 = vld [vmem:[%s198 + $0x30] sm:$0xff]
      %v217 = vld [vmem:[%s198 + $0x38] sm:$0xff]
      %v218 = vld [vmem:[%s198 + $0x40] sm:$0xff]
      %v219 = vld [vmem:[%s198 + $0x48] sm:$0xff]
      %v220 = vld [vmem:[%s198 + $0x50] sm:$0xff]
      %v221 = vld [vmem:[%s198 + $0x58] sm:$0xff]
      %v222 = vld [vmem:[%s198 + $0x60] sm:$0xff]
      %v223 = vld [vmem:[%s198 + $0x68] sm:$0xff]
      %v224 = vld [vmem:[%s198 + $0x70] sm:$0xff]
      %v225 = vld [vmem:[%s198 + $0x78] sm:$0xff]
      %v226 = vld [vmem:[%s1] sm:$0x1]
      %v228 = vlaneseq
      %v229 = vshrl.u32 %v228, 7
      %v230 = vsub.s32 0, %v229
      %v231 = vrot.slane %v226, %v230
      %v233 = vmul.f32 %v210, %v231
      %v234 = vmul.f32 %v211, %v231
      %v235 = vmul.f32 %v212, %v231
      %v236 = vmul.f32 %v213, %v231
      %v237 = vmul.f32 %v214, %v231
      %v238 = vmul.f32 %v215, %v231
      %v239 = vmul.f32 %v216, %v231
      %v240 = vmul.f32 %v217, %v231
      %v241 = vmul.f32 %v218, %v231
      %v242 = vmul.f32 %v219, %v231
      %v243 = vmul.f32 %v220, %v231
      %v244 = vmul.f32 %v221, %v231
      %v245 = vmul.f32 %v222, %v231
      %v246 = vmul.f32 %v223, %v231
      %v247 = vmul.f32 %v224, %v231
      %v248 = vmul.f32 %v225, %v231
      %v249 = vld [vmem:[%s2] sm:$0x1]
      %v251 = vlaneseq
      %v252 = vshrl.u32 %v251, 7
      %v253 = vsub.s32 0, %v252
      %v254 = vrot.slane %v249, %v253
      %v256 = vadd.f32 %v233, %v254
      %v257 = vadd.f32 %v234, %v254
      %v258 = vadd.f32 %v235, %v254
      %v259 = vadd.f32 %v236, %v254
      %v260 = vadd.f32 %v237, %v254
      %v261 = vadd.f32 %v238, %v254
      %v262 = vadd.f32 %v239, %v254
      %v263 = vadd.f32 %v240, %v254
      %v264 = vadd.f32 %v241, %v254
      %v265 = vadd.f32 %v242, %v254
      %v266 = vadd.f32 %v243, %v254
      %v267 = vadd.f32 %v244, %v254
      %v268 = vadd.f32 %v245, %v254
      %v269 = vadd.f32 %v246, %v254
      %v270 = vadd.f32 %v247, %v254
      %v271 = vadd.f32 %v248, %v254
      %vm272 = vcmp.gt.f32.partialorder %v256, 0.0
      %vm273 = vcmp.gt.f32.partialorder %v257, 0.0
      %vm274 = vcmp.gt.f32.partialorder %v258, 0.0
      %vm275 = vcmp.gt.f32.partialorder %v259, 0.0
      %vm276 = vcmp.gt.f32.partialorder %v260, 0.0
      %vm277 = vcmp.gt.f32.partialorder %v261, 0.0
      %vm278 = vcmp.gt.f32.partialorder %v262, 0.0
      %vm279 = vcmp.gt.f32.partialorder %v263, 0.0
      %vm280 = vcmp.gt.f32.partialorder %v264, 0.0
      %vm281 = vcmp.gt.f32.partialorder %v265, 0.0
      %vm282 = vcmp.gt.f32.partialorder %v266, 0.0
      %vm283 = vcmp.gt.f32.partialorder %v267, 0.0
      %vm284 = vcmp.gt.f32.partialorder %v268, 0.0
      %vm285 = vcmp.gt.f32.partialorder %v269, 0.0
      %vm286 = vcmp.gt.f32.partialorder %v270, 0.0
      %vm287 = vcmp.gt.f32.partialorder %v271, 0.0
      %v288 = vmul.f32 %v256, 0.1
      %v289 = vmul.f32 %v257, 0.1
      %v290 = vmul.f32 %v258, 0.1
      %v291 = vmul.f32 %v259, 0.1
      %v292 = vmul.f32 %v260, 0.1
      %v293 = vmul.f32 %v261, 0.1
      %v294 = vmul.f32 %v262, 0.1
      %v295 = vmul.f32 %v263, 0.1
      %v296 = vmul.f32 %v264, 0.1
      %v297 = vmul.f32 %v265, 0.1
      %v298 = vmul.f32 %v266, 0.1
      %v299 = vmul.f32 %v267, 0.1
      %v300 = vmul.f32 %v268, 0.1
      %v301 = vmul.f32 %v269, 0.1
      %v302 = vmul.f32 %v270, 0.1
      %v303 = vmul.f32 %v271, 0.1
      %v304 = vsel %vm272, %v256, %v288
      %v305 = vsel %vm273, %v257, %v289
      %v306 = vsel %vm274, %v258, %v290
      %v307 = vsel %vm275, %v259, %v291
      %v308 = vsel %vm276, %v260, %v292
      %v309 = vsel %vm277, %v261, %v293
      %v310 = vsel %vm278, %v262, %v294
      %v311 = vsel %vm279, %v263, %v295
      %v312 = vsel %vm280, %v264, %v296
      %v313 = vsel %vm281, %v265, %v297
      %v314 = vsel %vm282, %v266, %v298
      %v315 = vsel %vm283, %v267, %v299
      %v316 = vsel %vm284, %v268, %v300
      %v317 = vsel %vm285, %v269, %v301
      %v318 = vsel %vm286, %v270, %v302
      %v319 = vsel %vm287, %v271, %v303
      %320 = vst [vmem:[%s208] sm:$0xff] %v304
      %321 = vst [vmem:[%s208 + $0x8] sm:$0xff] %v305
      %322 = vst [vmem:[%s208 + $0x10] sm:$0xff] %v306
      %323 = vst [vmem:[%s208 + $0x18] sm:$0xff] %v307
      %324 = vst [vmem:[%s208 + $0x20] sm:$0xff] %v308
      %325 = vst [vmem:[%s208 + $0x28] sm:$0xff] %v309
      %326 = vst [vmem:[%s208 + $0x30] sm:$0xff] %v310
      %327 = vst [vmem:[%s208 + $0x38] sm:$0xff] %v311
      %328 = vst [vmem:[%s208 + $0x40] sm:$0xff] %v312
      %329 = vst [vmem:[%s208 + $0x48] sm:$0xff] %v313
      %330 = vst [vmem:[%s208 + $0x50] sm:$0xff] %v314
      %331 = vst [vmem:[%s208 + $0x58] sm:$0xff] %v315
      %332 = vst [vmem:[%s208 + $0x60] sm:$0xff] %v316
      %333 = vst [vmem:[%s208 + $0x68] sm:$0xff] %v317
      %334 = vst [vmem:[%s208 + $0x70] sm:$0xff] %v318
      %335 = vst [vmem:[%s208 + $0x78] sm:$0xff] %v319
      %s336 = smul.u32 16, %s19
      %p337 = scmp.lt.s32.totalorder %s18, 1
      %s338 = scalar_select %p337, %s18, 1
      %p339 = scmp.lt.s32.totalorder %s336, 31
      %s340 = scalar_select %p339, %s336, 31
      %s341 = smul.addr %s338, 32
      %s342 = sadd.s32 %s340, %s341
      %s343 = smul.addr %s342, 8
      %s344 = scalar_lea.vmem %s3, %s343
      // Predicated region
      $region33: #{double_conv_forward.5} parent=31 // pred_check
        %p345 = pneg %p116
      $region34: #{double_conv_forward.5} parent=31 // pred_check_branch
        %347 = sbr.rel (%p345) target = $region36
      $region35: #{double_conv_forward.5} parent=31 // pred_region
        %s348 = smul.u32 16, %s19
      $region36: #{double_conv_forward.5} parent=31 // pred_fallthru
        _
    $region32: #{double_conv_forward.5} parent=5 // pred_fallthru
      _
    %p349 = scmp.le.s32.totalorder 2, %s9
    // Predicated region
    $region37: #{double_conv_forward.5} parent=5 // pred_check
      %p350 = pneg %p349
    $region38: #{double_conv_forward.5} parent=5 // pred_check_branch
      %352 = sbr.rel (%p350) target = $region40
    $region39: #{double_conv_forward.5} parent=5 // pred_region
      %s353 = ssub.s32 %s9, 2
      // Predicated region
      $region41: #{double_conv_forward.5} parent=39 // pred_check
        %p354 = pneg %p122
      $region42: #{double_conv_forward.5} parent=39 // pred_check_branch
        %356 = sbr.rel (%p354) target = $region44
      $region43: #{double_conv_forward.5} parent=39 // pred_region
        %s357 = smul.u32 16, %s21
        %p358 = scmp.lt.s32.totalorder %s20, 1
        %s359 = scalar_select %p358, %s20, 1
        %p360 = scmp.lt.s32.totalorder %s357, 31
        %s361 = scalar_select %p360, %s357, 31
        %s362 = smul.addr %s359, 32
        %s363 = sadd.s32 %s361, %s362
        %s364 = smul.addr %s363, 8
        %s365 = scalar_lea.vmem %s3, %s364
      $region44: #{double_conv_forward.5} parent=39 // pred_fallthru
        _
    $region40: #{double_conv_forward.5} parent=5 // pred_fallthru
      _
  $region6: #{double_conv_forward.5} parent=0 // loop_footer
    %s13 = sadd.s32 1, %s9
  $region7: #{double_conv_forward.5} parent=0 // loop_footer_branch
    %8 = sbr.rel target = $region3
  $region8: #{double_conv_forward.5} parent=0 // loop_exit
    _

// kernel: double_conv_forward.4
$region0: #{double_conv_forward.4}
  #allocation0 [shape = 'u32[]', space=smem, size = 0x4, offset = 0x4, fixed_abs, tag = 'smem constant byte address 0x4 - core index']
  #allocation1 [shape = 'u32[144,128]{1,0:T(1,128)}', space=vmem, size = 0x12000, scoped, tag = 'internal scratch']
  %s0 = inlined_call_operand.vmem [shape: bf16[2,18,18,128], index: 0, kind: input, shape index: {}, may-alias: {0,1}]
  %s1 = inlined_call_operand.vmem [shape: bf16[2,18,18,128], index: 1, kind: input, shape index: {}, may-alias: {0,1}]
  %s2 = inlined_call_operand.vmem [shape: bf16[1152,128], index: 2, kind: input, shape index: {}]
  %s3 = inlined_call_operand.vmem [shape: f32[2,256,128], index: 3, kind: output, shape index: {0}]
  %s4 = inlined_call_operand.vmem [shape: f32[2,2,2,128], index: 4, kind: output, shape index: {1}]
  %5 = xla_tuple %s3, %s4
  %s6 = sld [smem:[#allocation0]]
  $region53: #{double_conv_forward.4} parent=0
    _
  %s8 = ssub.s32 1, %s6
  %s9 = scalar_select 0, %s8, %s6
  loop: start=0, step=1, limit=6
  $region2: #{double_conv_forward.4} parent=0 // loop_pre_header
    _
  $region3: #{double_conv_forward.4} parent=0 // loop_header
    %s11 = sphi 0, %s15
    %p12 = scmp.ge.s32.totalorder %s11, 6
    %s18 = sphi 0, %s30
    %s19 = sphi 0, %s26
    %s20 = sphi 0, %s18
    %s21 = sphi 0, %s19
    %s22 = sphi 0, %s20
    %s23 = sphi 0, %s21
    %s35 = sphi 0, %s37
    %s38 = sphi 0, %s35
    %s39 = sphi 0, %s38
    %s55 = sphi 0, %s39
    %s67 = sphi 0, %s69
    %s70 = sphi 0, %s67
    %s71 = sphi 0, %s70
    %s87 = sphi 0, %s71
    %s91 = sphi 0, %s91
    %s93 = sphi 0, %s91
    %s94 = sphi 0, %s93
    %s108 = sphi 0, %s94
    %s116 = sphi 0, %s118
    %s119 = sphi 0, %s116
    %s120 = sphi 0, %s119
    %s136 = sphi 0, %s120
    %s144 = sphi 0, %s146
    %s147 = sphi 0, %s144
    %s148 = sphi 0, %s147
    %s164 = sphi 0, %s148
  $region4: #{double_conv_forward.4} parent=0 // loop_header_branch
    %14 = sbr.rel (%p12) target = $region8
  $region5: #{double_conv_forward.4} parent=0 // loop_body
    %s16 = ssub.s32 %s11, 1
    %s17 = ssub.s32 %s11, 2
    %s24 = sadd.s32 1, %s19
    %p25 = scmp.ge.s32.totalorder %s24, 2
    %s26 = scalar_select %p25, 0, %s24
    %s27 = sadd.s32 1, %s18
    %s28 = scalar_select %p25, %s27, %s18
    %p29 = scmp.ge.s32.totalorder %s28, 2
    %s30 = scalar_select %p29, 0, %s28
    %s31 = ssub.s32 %s18, %s30
    %s32 = ssub.s32 %s19, %s26
    %s33 = sor.u32 %s31, %s32
    %p34 = scmp.eq.s32.totalorder %s33, 0
    %s36 = sadd.s32 %s35, 1
    %s37 = scalar_select %p34, %s35, %s36
    %p40 = pneg %p34
    %p41 = scmp.eq.s32.totalorder %s11, 3
    %p42 = por %p40, %p41
    %p43 = scmp.ne.s32.totalorder %s35, %s38
    %p44 = scmp.eq.s32.totalorder %s11, 0
    %p45 = por %p43, %p44
    %p46 = scmp.ne.s32.totalorder %s35, %s38
    %p47 = scmp.eq.s32.totalorder %s16, 3
    %p48 = por %p46, %p47
    %p49 = scmp.ne.s32.totalorder %s38, %s39
    %p50 = scmp.eq.s32.totalorder %s16, 0
    %p51 = por %p49, %p50
    %p52 = scmp.ne.s32.totalorder %s38, %s39
    %p53 = scmp.eq.s32.totalorder %s17, 3
    %p54 = por %p52, %p53
    %p56 = scmp.ne.s32.totalorder %s39, %s55
    %p57 = scmp.eq.s32.totalorder %s17, 0
    %p58 = por %p56, %p57
    %s59 = sadd.s32 %s19, 1
    %s60 = smul.u32 %s59, 4
    %s61 = sadd.s32 %s26, 1
    %s62 = smul.u32 %s61, 4
    %s63 = ssub.s32 %s18, %s30
    %s64 = ssub.s32 %s60, %s62
    %s65 = sor.u32 %s63, %s64
    %p66 = scmp.eq.s32.totalorder %s65, 0
    %s68 = sadd.s32 %s67, 1
    %s69 = scalar_select %p66, %s67, %s68
    %p72 = pneg %p66
    %p73 = scmp.eq.s32.totalorder %s11, 3
    %p74 = por %p72, %p73
    %p75 = scmp.ne.s32.totalorder %s67, %s70
    %p76 = scmp.eq.s32.totalorder %s11, 0
    %p77 = por %p75, %p76
    %p78 = scmp.ne.s32.totalorder %s67, %s70
    %p79 = scmp.eq.s32.totalorder %s16, 3
    %p80 = por %p78, %p79
    %p81 = scmp.ne.s32.totalorder %s70, %s71
    %p82 = scmp.eq.s32.totalorder %s16, 0
    %p83 = por %p81, %p82
    %p84 = scmp.ne.s32.totalorder %s70, %s71
    %p85 = scmp.eq.s32.totalorder %s17, 3
    %p86 = por %p84, %p85
    %p88 = scmp.ne.s32.totalorder %s71, %s87
    %p89 = scmp.eq.s32.totalorder %s17, 0
    %p90 = por %p88, %p89
    %s92 = sadd.s32 %s91, 1
    %p95 = scmp.eq.s32.totalorder %s11, 3
    %p96 = scmp.ne.s32.totalorder %s91, %s93
    %p97 = scmp.eq.s32.totalorder %s11, 0
    %p98 = por %p96, %p97
    %p99 = scmp.ne.s32.totalorder %s91, %s93
    %p100 = scmp.eq.s32.totalorder %s16, 3
    %p101 = por %p99, %p100
    %p102 = scmp.ne.s32.totalorder %s93, %s94
    %p103 = scmp.eq.s32.totalorder %s16, 0
    %p104 = por %p102, %p103
    %p105 = scmp.ne.s32.totalorder %s93, %s94
    %p106 = scmp.eq.s32.totalorder %s17, 3
    %p107 = por %p105, %p106
    %p109 = scmp.ne.s32.totalorder %s94, %s108
    %p110 = scmp.eq.s32.totalorder %s17, 0
    %p111 = por %p109, %p110
    %s112 = ssub.s32 %s18, %s30
    %s113 = ssub.s32 %s19, %s26
    %s114 = sor.u32 %s112, %s113
    %p115 = scmp.eq.s32.totalorder %s114, 0
    %s117 = sadd.s32 %s116, 1
    %s118 = scalar_select %p115, %s116, %s117
    %p121 = pneg %p115
    %p122 = scmp.eq.s32.totalorder %s11, 3
    %p123 = por %p121, %p122
    %p124 = scmp.ne.s32.totalorder %s116, %s119
    %p125 = scmp.eq.s32.totalorder %s11, 0
    %p126 = por %p124, %p125
    %p127 = scmp.ne.s32.totalorder %s116, %s119
    %p128 = scmp.eq.s32.totalorder %s16, 3
    %p129 = por %p127, %p128
    %p130 = scmp.ne.s32.totalorder %s119, %s120
    %p131 = scmp.eq.s32.totalorder %s16, 0
    %p132 = por %p130, %p131
    %p133 = scmp.ne.s32.totalorder %s119, %s120
    %p134 = scmp.eq.s32.totalorder %s17, 3
    %p135 = por %p133, %p134
    %p137 = scmp.ne.s32.totalorder %s120, %s136
    %p138 = scmp.eq.s32.totalorder %s17, 0
    %p139 = por %p137, %p138
    %s140 = ssub.s32 %s18, %s30
    %s141 = ssub.s32 %s19, %s26
    %s142 = sor.u32 %s140, %s141
    %p143 = scmp.eq.s32.totalorder %s142, 0
    %s145 = sadd.s32 %s144, 1
    %s146 = scalar_select %p143, %s144, %s145
    %p149 = pneg %p143
    %p150 = scmp.eq.s32.totalorder %s11, 3
    %p151 = por %p149, %p150
    %p152 = scmp.ne.s32.totalorder %s144, %s147
    %p153 = scmp.eq.s32.totalorder %s11, 0
    %p154 = por %p152, %p153
    %p155 = scmp.ne.s32.totalorder %s144, %s147
    %p156 = scmp.eq.s32.totalorder %s16, 3
    %p157 = por %p155, %p156
    %p158 = scmp.ne.s32.totalorder %s147, %s148
    %p159 = scmp.eq.s32.totalorder %s16, 0
    %p160 = por %p158, %p159
    %p161 = scmp.ne.s32.totalorder %s147, %s148
    %p162 = scmp.eq.s32.totalorder %s17, 3
    %p163 = por %p161, %p162
    %p165 = scmp.ne.s32.totalorder %s148, %s164
    %p166 = scmp.eq.s32.totalorder %s17, 0
    %p167 = por %p165, %p166
    %p168 = scmp.le.s32.totalorder 1, %s11
    %p169 = scmp.lt.s32.totalorder %s11, 5
    %p170 = pnand %p168, %p169
    %p171 = pneg %p170
    // Predicated region
    $region9: #{double_conv_forward.4} parent=5 // pred_check
      _
    $region10: #{double_conv_forward.4} parent=5 // pred_check_branch
      %173 = sbr.rel (%p170) target = $region12
    $region11: #{double_conv_forward.4} parent=5 // pred_region
      %s174 = ssub.s32 %s11, 1
      // Predicated region
      $region13: #{double_conv_forward.4} parent=11 // pred_check
        %p175 = pneg %p104
      $region14: #{double_conv_forward.4} parent=11 // pred_check_branch
        %177 = sbr.rel (%p175) target = $region16
      $region15: #{double_conv_forward.4} parent=11 // pred_region
        _
      $region16: #{double_conv_forward.4} parent=11 // pred_fallthru
        _
    $region12: #{double_conv_forward.4} parent=5 // pred_fallthru
      _
    %p178 = scmp.lt.s32.totalorder %s11, 4
    // Predicated region
    $region17: #{double_conv_forward.4} parent=5 // pred_check
      %p179 = pneg %p178
    $region18: #{double_conv_forward.4} parent=5 // pred_check_branch
      %181 = sbr.rel (%p179) target = $region20
    $region19: #{double_conv_forward.4} parent=5 // pred_region
      // Predicated region
      $region21: #{double_conv_forward.4} parent=19 // pred_check
        %p182 = pneg %p45
      $region22: #{double_conv_forward.4} parent=19 // pred_check_branch
        %184 = sbr.rel (%p182) target = $region24
      $region23: #{double_conv_forward.4} parent=19 // pred_region
        %s185 = smul.u32 8, %s19
        %s186 = ssub.s32 18, %s185
        %p187 = scmp.lt.s32.totalorder %s186, 8
        %s188 = scalar_select %p187, %s186, 8
        %s189 = smul.u32 64, %s188
        %s190 = smul.u32 %s189, 3
        %p191 = scmp.lt.s32.totalorder %s18, 1
        %s192 = scalar_select %p191, %s18, 1
        %p193 = scmp.lt.s32.totalorder %s185, 17
        %s194 = scalar_select %p193, %s185, 17
        %s195 = smul.addr %s194, 3
        %s196 = smul.addr %s192, 54
        %s197 = sadd.s32 %s195, %s196
        %s198 = smul.addr %s197, 4
        %s199 = scalar_lea.vmem %s0, %s198
        %s200 = smul.u32 8, %s19
        %s201 = ssub.s32 18, %s200
        %p202 = scmp.lt.s32.totalorder %s201, 8
        %s203 = scalar_select %p202, %s201, 8
        %s204 = smul.u32 64, %s203
        %s205 = smul.u32 %s204, 3
      $region24: #{double_conv_forward.4} parent=19 // pred_fallthru
        _
      // Predicated region
      $region25: #{double_conv_forward.4} parent=19 // pred_check
        %p206 = pneg %p77
      $region26: #{double_conv_forward.4} parent=19 // pred_check_branch
        %208 = sbr.rel (%p206) target = $region28
      $region27: #{double_conv_forward.4} parent=19 // pred_region
        %s209 = sadd.s32 %s19, 1
        %s210 = smul.u32 %s209, 4
        %s211 = smul.u32 2, %s210
        %p212 = scmp.lt.s32.totalorder %s18, 1
        %s213 = scalar_select %p212, %s18, 1
        %p214 = scmp.lt.s32.totalorder %s211, 17
        %s215 = scalar_select %p214, %s211, 17
        %s216 = smul.addr %s215, 3
        %s217 = smul.addr %s213, 54
        %s218 = sadd.s32 %s216, %s217
        %s219 = smul.addr %s218, 4
        %s220 = scalar_lea.vmem %s1, %s219
        %s221 = sadd.s32 %s19, 1
        %s222 = smul.u32 %s221, 4
        %s223 = smul.u32 2, %s222
      $region28: #{double_conv_forward.4} parent=19 // pred_fallthru
        _
    $region20: #{double_conv_forward.4} parent=5 // pred_fallthru
      _
    %p224 = scmp.le.s32.totalorder 1, %s11
    %p225 = scmp.lt.s32.totalorder %s11, 5
    %p226 = pnand %p224, %p225
    %p227 = pneg %p226
    // Predicated region
    $region29: #{double_conv_forward.4} parent=5 // pred_check
      _
    $region30: #{double_conv_forward.4} parent=5 // pred_check_branch
      %229 = sbr.rel (%p226) target = $region32
    $region31: #{double_conv_forward.4} parent=5 // pred_region
      %s230 = ssub.s32 %s11, 1
      %s231 = smul.u32 8, %s21
      %s232 = ssub.s32 18, %s231
      %p233 = scmp.lt.s32.totalorder %s232, 8
      %s234 = scalar_select %p233, %s232, 8
      %s235 = smul.u32 64, %s234
      %s236 = smul.u32 %s235, 3
      %p237 = scmp.lt.s32.totalorder %s20, 1
      %s238 = scalar_select %p237, %s20, 1
      %p239 = scmp.lt.s32.totalorder %s231, 17
      %s240 = scalar_select %p239, %s231, 17
      %s241 = smul.addr %s240, 3
      %s242 = smul.addr %s238, 54
      %s243 = sadd.s32 %s241, %s242
      %s244 = smul.addr %s243, 4
      %s245 = scalar_lea.vmem %s0, %s244
      %p246 = pneg %p51
      %p247 = pneg %p48
      %s248 = sadd.s32 %s21, 1
      %s249 = smul.u32 %s248, 4
      %s250 = smul.u32 2, %s249
      %p251 = scmp.lt.s32.totalorder %s20, 1
      %s252 = scalar_select %p251, %s20, 1
      %p253 = scmp.lt.s32.totalorder %s250, 17
      %s254 = scalar_select %p253, %s250, 17
      %s255 = smul.addr %s254, 3
      %s256 = smul.addr %s252, 54
      %s257 = sadd.s32 %s255, %s256
      %s258 = smul.addr %s257, 4
      %s259 = scalar_lea.vmem %s1, %s258
      %p260 = pneg %p83
      %p261 = pneg %p80
      %p262 = pneg %p104
      %p263 = pneg %p101
      %p264 = pneg %p132
      %p265 = pneg %p129
      %s266 = smul.u32 16, %s21
      %p267 = scmp.lt.s32.totalorder %s20, 1
      %s268 = scalar_select %p267, %s20, 1
      %p269 = scmp.lt.s32.totalorder %s266, 31
      %s270 = scalar_select %p269, %s266, 31
      %s271 = smul.addr %s268, 32
      %s272 = sadd.s32 %s270, %s271
      %s273 = smul.addr %s272, 8
      %s274 = scalar_lea.vmem %s3, %s273
      %p275 = pneg %p160
      %p276 = pneg %p157
      %p277 = scmp.lt.s32.totalorder %s20, 1
      %s278 = scalar_select %p277, %s20, 1
      %p279 = scmp.lt.s32.totalorder %s21, 1
      %s280 = scalar_select %p279, %s21, 1
      %s281 = smul.addr %s278, 2
      %s282 = sadd.s32 %s280, %s281
      %s283 = smul.addr %s282, 2
      %s284 = scalar_lea.vmem %s4, %s283
      %s285 = smul.u32 8, %s21
      %s286 = ssub.s32 18, %s285
      %p287 = scmp.lt.s32.totalorder %s286, 8
      %s288 = scalar_select %p287, %s286, 8
      %s289 = smul.u32 64, %s288
      %s290 = smul.u32 %s289, 3
      %p291 = scmp.lt.s32.totalorder %s20, 1
      %s292 = scalar_select %p291, %s20, 1
      %p293 = scmp.lt.s32.totalorder %s285, 17
      %s294 = scalar_select %p293, %s285, 17
      %s295 = smul.addr %s294, 3
      %s296 = smul.addr %s292, 54
      %s297 = sadd.s32 %s295, %s296
      %s298 = smul.addr %s297, 4
      %s299 = scalar_lea.vmem %s0, %s298
      %s300 = smul.u32 8, %s21
      %s301 = ssub.s32 18, %s300
      %p302 = scmp.lt.s32.totalorder %s301, 8
      %s303 = scalar_select %p302, %s301, 8
      %s304 = smul.u32 64, %s303
      %s305 = smul.u32 %s304, 3
      %s306 = sadd.s32 %s21, 1
      %s307 = smul.u32 %s306, 4
      %s308 = smul.u32 2, %s307
      %p309 = scmp.lt.s32.totalorder %s20, 1
      %s310 = scalar_select %p309, %s20, 1
      %p311 = scmp.lt.s32.totalorder %s308, 17
      %s312 = scalar_select %p311, %s308, 17
      %s313 = smul.addr %s312, 3
      %s314 = smul.addr %s310, 54
      %s315 = sadd.s32 %s313, %s314
      %s316 = smul.addr %s315, 4
      %s317 = scalar_lea.vmem %s1, %s316
      %s318 = sadd.s32 %s21, 1
      %s319 = smul.u32 %s318, 4
      %s320 = smul.u32 2, %s319
      %s321 = smul.u32 16, %s21
      %p322 = scmp.lt.s32.totalorder %s20, 1
      %s323 = scalar_select %p322, %s20, 1
      %p324 = scmp.lt.s32.totalorder %s321, 31
      %s325 = scalar_select %p324, %s321, 31
      %s326 = smul.addr %s323, 32
      %s327 = sadd.s32 %s325, %s326
      %s328 = smul.addr %s327, 8
      %s329 = scalar_lea.vmem %s3, %s328
      %s330 = smul.u32 16, %s21
      %p331 = scmp.lt.s32.totalorder %s20, 1
      %s332 = scalar_select %p331, %s20, 1
      %p333 = scmp.lt.s32.totalorder %s21, 1
      %s334 = scalar_select %p333, %s21, 1
      %s335 = smul.addr %s332, 2
      %s336 = sadd.s32 %s334, %s335
      %s337 = smul.addr %s336, 2
      %s338 = scalar_lea.vmem %s4, %s337
      %v340 = vld [vmem:[%s299] sm:$0xf]
      %v341 = vld [vmem:[%s299 + $0x4] sm:$0xf]
      %v342 = vld [vmem:[%s299 + $0x8] sm:$0x1]
      %v343 = vld [vmem:[%s299 + $0xc] sm:$0xf]
      %v344 = vld [vmem:[%s299 + $0x10] sm:$0xf]
      %v345 = vld [vmem:[%s299 + $0x14] sm:$0x1]
      %v346 = vld [vmem:[%s299 + $0x18] sm:$0xf]
      %v347 = vld [vmem:[%s299 + $0x1c] sm:$0xf]
      %v348 = vld [vmem:[%s299 + $0x20] sm:$0x1]
      %v349 = vld [vmem:[%s299 + $0x24] sm:$0xf]
      %v350 = vld [vmem:[%s299 + $0x28] sm:$0xf]
      %v351 = vld [vmem:[%s299 + $0x2c] sm:$0x1]
      %v352 = vld [vmem:[%s299 + $0x30] sm:$0xf]
      %v353 = vld [vmem:[%s299 + $0x34] sm:$0xf]
      %v354 = vld [vmem:[%s299 + $0x38] sm:$0x1]
      %v355 = vld [vmem:[%s299 + $0x3c] sm:$0xf]
      %v356 = vld [vmem:[%s299 + $0x40] sm:$0xf]
      %v357 = vld [vmem:[%s299 + $0x44] sm:$0x1]
      %v358 = vld [vmem:[%s299 + $0x48] sm:$0xf]
      %v359 = vld [vmem:[%s299 + $0x4c] sm:$0xf]
      %v360 = vld [vmem:[%s299 + $0x50] sm:$0x1]
      %v361 = vld [vmem:[%s299 + $0x54] sm:$0xf]
      %v362 = vld [vmem:[%s299 + $0x58] sm:$0xf]
      %v363 = vld [vmem:[%s299 + $0x5c] sm:$0x1]
      %v364 = vld [vmem:[%s317] sm:$0xf]
      %v365 = vld [vmem:[%s317 + $0x4] sm:$0xf]
      %v366 = vld [vmem:[%s317 + $0x8] sm:$0x1]
      %v367 = vld [vmem:[%s317 + $0xc] sm:$0xf]
      %v368 = vld [vmem:[%s317 + $0x10] sm:$0xf]
      %v369 = vld [vmem:[%s317 + $0x14] sm:$0x1]
      %v386 = vunpack.c.l.b16 %v340
      %v387 = vunpack.c.l.b16 %v341
      %v388 = vunpack.c.l.b16 %v343
      %v389 = vunpack.c.l.b16 %v344
      %v390 = vunpack.c.l.b16 %v346
      %v391 = vunpack.c.l.b16 %v347
      %v392 = vunpack.c.l.b16 %v349
      %v393 = vunpack.c.l.b16 %v350
      %v394 = vunpack.c.l.b16 %v352
      %v395 = vunpack.c.l.b16 %v353
      %v396 = vunpack.c.l.b16 %v355
      %v397 = vunpack.c.l.b16 %v356
      %v398 = vunpack.c.l.b16 %v358
      %v399 = vunpack.c.l.b16 %v359
      %v400 = vunpack.c.l.b16 %v361
      %v401 = vunpack.c.l.b16 %v362
      %v402 = vpack.c.b16 %v387, %v386
      %v403 = vpack.c.b16 %v389, %v388
      %v404 = vpack.c.b16 %v391, %v390
      %v405 = vpack.c.b16 %v393, %v392
      %v406 = vpack.c.b16 %v395, %v394
      %v407 = vpack.c.b16 %v397, %v396
      %v408 = vpack.c.b16 %v399, %v398
      %v409 = vpack.c.b16 %v401, %v400
      %v426 = vunpack.c.l.b16 %v342
      %v427 = vunpack.c.l.b16 %v345
      %v428 = vunpack.c.l.b16 %v348
      %v429 = vunpack.c.l.b16 %v351
      %v430 = vunpack.c.l.b16 %v354
      %v431 = vunpack.c.l.b16 %v357
      %v432 = vunpack.c.l.b16 %v360
      %v433 = vunpack.c.l.b16 %v363
      %v434 = vpack.c.b16 %v426, %v426
      %v435 = vpack.c.b16 %v427, %v427
      %v436 = vpack.c.b16 %v428, %v428
      %v437 = vpack.c.b16 %v429, %v429
      %v438 = vpack.c.b16 %v430, %v430
      %v439 = vpack.c.b16 %v431, %v431
      %v440 = vpack.c.b16 %v432, %v432
      %v441 = vpack.c.b16 %v433, %v433
      %vm442 = vsmask.f32 7424
      %v444 = vshrl.u32 %v402, 16
      %v446 = vshll.u32 %v402, 16
      %v448 = vrot.slane %v446, 1
      %v449 = vor.u32 %v444, %v448
      %v451 = vshll.u32 %v434, 16
      %v453 = vrot.slane %v451, 1
      %v454 = vsel %vm442, %v449, %v453
      %v456 = vshrl.u32 %v403, 16
      %v458 = vshll.u32 %v403, 16
      %v460 = vrot.slane %v458, 1
      %v461 = vor.u32 %v456, %v460
      %v463 = vshll.u32 %v435, 16
      %v465 = vrot.slane %v463, 1
      %v466 = vsel %vm442, %v461, %v465
      %v468 = vshrl.u32 %v404, 16
      %v470 = vshll.u32 %v404, 16
      %v472 = vrot.slane %v470, 1
      %v473 = vor.u32 %v468, %v472
      %v475 = vshll.u32 %v436, 16
      %v477 = vrot.slane %v475, 1
      %v478 = vsel %vm442, %v473, %v477
      %v480 = vshrl.u32 %v405, 16
      %v482 = vshll.u32 %v405, 16
      %v484 = vrot.slane %v482, 1
      %v485 = vor.u32 %v480, %v484
      %v487 = vshll.u32 %v437, 16
      %v489 = vrot.slane %v487, 1
      %v490 = vsel %vm442, %v485, %v489
      %v492 = vshrl.u32 %v406, 16
      %v494 = vshll.u32 %v406, 16
      %v496 = vrot.slane %v494, 1
      %v497 = vor.u32 %v492, %v496
      %v499 = vshll.u32 %v438, 16
      %v501 = vrot.slane %v499, 1
      %v502 = vsel %vm442, %v497, %v501
      %v504 = vshrl.u32 %v407, 16
      %v506 = vshll.u32 %v407, 16
      %v508 = vrot.slane %v506, 1
      %v509 = vor.u32 %v504, %v508
      %v511 = vshll.u32 %v439, 16
      %v513 = vrot.slane %v511, 1
      %v514 = vsel %vm442, %v509, %v513
      %v516 = vshrl.u32 %v408, 16
      %v518 = vshll.u32 %v408, 16
      %v520 = vrot.slane %v518, 1
      %v521 = vor.u32 %v516, %v520
      %v523 = vshll.u32 %v440, 16
      %v525 = vrot.slane %v523, 1
      %v526 = vsel %vm442, %v521, %v525
      %v528 = vshrl.u32 %v409, 16
      %v530 = vshll.u32 %v409, 16
      %v532 = vrot.slane %v530, 1
      %v533 = vor.u32 %v528, %v532
      %v535 = vshll.u32 %v441, 16
      %v537 = vrot.slane %v535, 1
      %v538 = vsel %vm442, %v533, %v537
      %vm547 = vcmask 1046528
      %v548 = vrot.slane %v402, 1
      %v549 = vrot.slane %v434, 1
      %v550 = vsel %vm547, %v548, %v549
      %v551 = vrot.slane %v403, 1
      %v552 = vrot.slane %v435, 1
      %v553 = vsel %vm547, %v551, %v552
      %v554 = vrot.slane %v404, 1
      %v555 = vrot.slane %v436, 1
      %v556 = vsel %vm547, %v554, %v555
      %v557 = vrot.slane %v405, 1
      %v558 = vrot.slane %v437, 1
      %v559 = vsel %vm547, %v557, %v558
      %v560 = vrot.slane %v406, 1
      %v561 = vrot.slane %v438, 1
      %v562 = vsel %vm547, %v560, %v561
      %v563 = vrot.slane %v407, 1
      %v564 = vrot.slane %v439, 1
      %v565 = vsel %vm547, %v563, %v564
      %v566 = vrot.slane %v408, 1
      %v567 = vrot.slane %v440, 1
      %v568 = vsel %vm547, %v566, %v567
      %v569 = vrot.slane %v409, 1
      %v570 = vrot.slane %v441, 1
      %v571 = vsel %vm547, %v569, %v570
      %v582 = vunpack.c.l.b16 %v364
      %v583 = vunpack.c.l.b16 %v365
      %v584 = vpack.c.b16 %v583, %v582
      %v587 = vunpack.c.l.b16 %v366
      %v588 = vpack.c.b16 %v587, %v587
      %v590 = vshrl.u32 %v584, 16
      %v592 = vshll.u32 %v584, 16
      %v594 = vrot.slane %v592, 1
      %v595 = vor.u32 %v590, %v594
      %v597 = vshll.u32 %v588, 16
      %v599 = vrot.slane %v597, 1
      %v600 = vsel %vm442, %v595, %v599
      %v602 = vrot.slane %v584, 1
      %v603 = vrot.slane %v588, 1
      %v604 = vsel %vm547, %v602, %v603
      %v608 = vunpack.c.l.b16 %v367
      %v609 = vunpack.c.l.b16 %v368
      %v610 = vpack.c.b16 %v609, %v608
      %v613 = vunpack.c.l.b16 %v369
      %v614 = vpack.c.b16 %v613, %v613
      %v616 = vshrl.u32 %v610, 16
      %v618 = vshll.u32 %v610, 16
      %v620 = vrot.slane %v618, 1
      %v621 = vor.u32 %v616, %v620
      %v623 = vshll.u32 %v614, 16
      %v625 = vrot.slane %v623, 1
      %v626 = vsel %vm442, %v621, %v625
      %v628 = vrot.slane %v610, 1
      %v629 = vrot.slane %v614, 1
      %v630 = vsel %vm547, %v628, %v629
      %v632 = vld [vmem:[%s2] sm:$0xf]
      %v633 = vld [vmem:[%s2 + $0x4] sm:$0xf]
      %v634 = vld [vmem:[%s2 + $0x8] sm:$0xf]
      %v635 = vld [vmem:[%s2 + $0xc] sm:$0xf]
      %v636 = vld [vmem:[%s2 + $0x10] sm:$0xf]
      %v637 = vld [vmem:[%s2 + $0x14] sm:$0xf]
      %v638 = vld [vmem:[%s2 + $0x18] sm:$0xf]
      %v639 = vld [vmem:[%s2 + $0x1c] sm:$0xf]
      %v640 = vld [vmem:[%s2 + $0x20] sm:$0xf]
      %v641 = vld [vmem:[%s2 + $0x24] sm:$0xf]
      %v642 = vld [vmem:[%s2 + $0x28] sm:$0xf]
      %v643 = vld [vmem:[%s2 + $0x2c] sm:$0xf]
      %v644 = vld [vmem:[%s2 + $0x30] sm:$0xf]
      %v645 = vld [vmem:[%s2 + $0x34] sm:$0xf]
      %v646 = vld [vmem:[%s2 + $0x38] sm:$0xf]
      %v647 = vld [vmem:[%s2 + $0x3c] sm:$0xf]
      %v648 = vld [vmem:[%s2 + $0x40] sm:$0xf]
      %v649 = vld [vmem:[%s2 + $0x44] sm:$0xf]
      %v650 = vld [vmem:[%s2 + $0x48] sm:$0xf]
      %v651 = vld [vmem:[%s2 + $0x4c] sm:$0xf]
      %v652 = vld [vmem:[%s2 + $0x50] sm:$0xf]
      %v653 = vld [vmem:[%s2 + $0x54] sm:$0xf]
      %v654 = vld [vmem:[%s2 + $0x58] sm:$0xf]
      %v655 = vld [vmem:[%s2 + $0x5c] sm:$0xf]
      %v656 = vld [vmem:[%s2 + $0x60] sm:$0xf]
      %v657 = vld [vmem:[%s2 + $0x64] sm:$0xf]
      %v658 = vld [vmem:[%s2 + $0x68] sm:$0xf]
      %v659 = vld [vmem:[%s2 + $0x6c] sm:$0xf]
      %v660 = vld [vmem:[%s2 + $0x70] sm:$0xf]
      %v661 = vld [vmem:[%s2 + $0x74] sm:$0xf]
      %v662 = vld [vmem:[%s2 + $0x78] sm:$0xf]
      %v663 = vld [vmem:[%s2 + $0x7c] sm:$0xf]
      %v664 = vld [vmem:[%s2 + $0x80] sm:$0xf]
      %v665 = vld [vmem:[%s2 + $0x84] sm:$0xf]
      %v666 = vld [vmem:[%s2 + $0x88] sm:$0xf]
      %v667 = vld [vmem:[%s2 + $0x8c] sm:$0xf]
      %v668 = vld [vmem:[%s2 + $0x90] sm:$0xf]
      %v669 = vld [vmem:[%s2 + $0x94] sm:$0xf]
      %v670 = vld [vmem:[%s2 + $0x98] sm:$0xf]
      %v671 = vld [vmem:[%s2 + $0x9c] sm:$0xf]
      %v672 = vld [vmem:[%s2 + $0xa0] sm:$0xf]
      %v673 = vld [vmem:[%s2 + $0xa4] sm:$0xf]
      %v674 = vld [vmem:[%s2 + $0xa8] sm:$0xf]
      %v675 = vld [vmem:[%s2 + $0xac] sm:$0xf]
      %v676 = vld [vmem:[%s2 + $0xb0] sm:$0xf]
      %v677 = vld [vmem:[%s2 + $0xb4] sm:$0xf]
      %v678 = vld [vmem:[%s2 + $0xb8] sm:$0xf]
      %v679 = vld [vmem:[%s2 + $0xbc] sm:$0xf]
      %v680 = vld [vmem:[%s2 + $0xc0] sm:$0xf]
      %v681 = vld [vmem:[%s2 + $0xc4] sm:$0xf]
      %v682 = vld [vmem:[%s2 + $0xc8] sm:$0xf]
      %v683 = vld [vmem:[%s2 + $0xcc] sm:$0xf]
      %v684 = vld [vmem:[%s2 + $0xd0] sm:$0xf]
      %v685 = vld [vmem:[%s2 + $0xd4] sm:$0xf]
      %v686 = vld [vmem:[%s2 + $0xd8] sm:$0xf]
      %v687 = vld [vmem:[%s2 + $0xdc] sm:$0xf]
      %v688 = vld [vmem:[%s2 + $0xe0] sm:$0xf]
      %v689 = vld [vmem:[%s2 + $0xe4] sm:$0xf]
      %v690 = vld [vmem:[%s2 + $0xe8] sm:$0xf]
      %v691 = vld [vmem:[%s2 + $0xec] sm:$0xf]
      %v692 = vld [vmem:[%s2 + $0xf0] sm:$0xf]
      %v693 = vld [vmem:[%s2 + $0xf4] sm:$0xf]
      %v694 = vld [vmem:[%s2 + $0xf8] sm:$0xf]
      %v695 = vld [vmem:[%s2 + $0xfc] sm:$0xf]
      %v696 = vld [vmem:[%s2 + $0x100] sm:$0xf]
      %v697 = vld [vmem:[%s2 + $0x104] sm:$0xf]
      %v698 = vld [vmem:[%s2 + $0x108] sm:$0xf]
      %v699 = vld [vmem:[%s2 + $0x10c] sm:$0xf]
      %v700 = vld [vmem:[%s2 + $0x110] sm:$0xf]
      %v701 = vld [vmem:[%s2 + $0x114] sm:$0xf]
      %v702 = vld [vmem:[%s2 + $0x118] sm:$0xf]
      %v703 = vld [vmem:[%s2 + $0x11c] sm:$0xf]
      %v704 = vld [vmem:[%s2 + $0x120] sm:$0xf]
      %v705 = vld [vmem:[%s2 + $0x124] sm:$0xf]
      %v706 = vld [vmem:[%s2 + $0x128] sm:$0xf]
      %v707 = vld [vmem:[%s2 + $0x12c] sm:$0xf]
      %v708 = vld [vmem:[%s2 + $0x130] sm:$0xf]
      %v709 = vld [vmem:[%s2 + $0x134] sm:$0xf]
      %v710 = vld [vmem:[%s2 + $0x138] sm:$0xf]
      %v711 = vld [vmem:[%s2 + $0x13c] sm:$0xf]
      %v712 = vld [vmem:[%s2 + $0x140] sm:$0xf]
      %v713 = vld [vmem:[%s2 + $0x144] sm:$0xf]
      %v714 = vld [vmem:[%s2 + $0x148] sm:$0xf]
      %v715 = vld [vmem:[%s2 + $0x14c] sm:$0xf]
      %v716 = vld [vmem:[%s2 + $0x150] sm:$0xf]
      %v717 = vld [vmem:[%s2 + $0x154] sm:$0xf]
      %v718 = vld [vmem:[%s2 + $0x158] sm:$0xf]
      %v719 = vld [vmem:[%s2 + $0x15c] sm:$0xf]
      %v720 = vld [vmem:[%s2 + $0x160] sm:$0xf]
      %v721 = vld [vmem:[%s2 + $0x164] sm:$0xf]
      %v722 = vld [vmem:[%s2 + $0x168] sm:$0xf]
      %v723 = vld [vmem:[%s2 + $0x16c] sm:$0xf]
      %v724 = vld [vmem:[%s2 + $0x170] sm:$0xf]
      %v725 = vld [vmem:[%s2 + $0x174] sm:$0xf]
      %v726 = vld [vmem:[%s2 + $0x178] sm:$0xf]
      %v727 = vld [vmem:[%s2 + $0x17c] sm:$0xf]
      %v728 = vld [vmem:[%s2 + $0x180] sm:$0xf]
      %v729 = vld [vmem:[%s2 + $0x184] sm:$0xf]
      %v730 = vld [vmem:[%s2 + $0x188] sm:$0xf]
      %v731 = vld [vmem:[%s2 + $0x18c] sm:$0xf]
      %v732 = vld [vmem:[%s2 + $0x190] sm:$0xf]
      %v733 = vld [vmem:[%s2 + $0x194] sm:$0xf]
      %v734 = vld [vmem:[%s2 + $0x198] sm:$0xf]
      %v735 = vld [vmem:[%s2 + $0x19c] sm:$0xf]
      %v736 = vld [vmem:[%s2 + $0x1a0] sm:$0xf]
      %v737 = vld [vmem:[%s2 + $0x1a4] sm:$0xf]
      %v738 = vld [vmem:[%s2 + $0x1a8] sm:$0xf]
      %v739 = vld [vmem:[%s2 + $0x1ac] sm:$0xf]
      %v740 = vld [vmem:[%s2 + $0x1b0] sm:$0xf]
      %v741 = vld [vmem:[%s2 + $0x1b4] sm:$0xf]
      %v742 = vld [vmem:[%s2 + $0x1b8] sm:$0xf]
      %v743 = vld [vmem:[%s2 + $0x1bc] sm:$0xf]
      %v744 = vld [vmem:[%s2 + $0x1c0] sm:$0xf]
      %v745 = vld [vmem:[%s2 + $0x1c4] sm:$0xf]
      %v746 = vld [vmem:[%s2 + $0x1c8] sm:$0xf]
      %v747 = vld [vmem:[%s2 + $0x1cc] sm:$0xf]
      %v748 = vld [vmem:[%s2 + $0x1d0] sm:$0xf]
      %v749 = vld [vmem:[%s2 + $0x1d4] sm:$0xf]
      %v750 = vld [vmem:[%s2 + $0x1d8] sm:$0xf]
      %v751 = vld [vmem:[%s2 + $0x1dc] sm:$0xf]
      %v752 = vld [vmem:[%s2 + $0x1e0] sm:$0xf]
      %v753 = vld [vmem:[%s2 + $0x1e4] sm:$0xf]
      %v754 = vld [vmem:[%s2 + $0x1e8] sm:$0xf]
      %v755 = vld [vmem:[%s2 + $0x1ec] sm:$0xf]
      %v756 = vld [vmem:[%s2 + $0x1f0] sm:$0xf]
      %v757 = vld [vmem:[%s2 + $0x1f4] sm:$0xf]
      %v758 = vld [vmem:[%s2 + $0x1f8] sm:$0xf]
      %v759 = vld [vmem:[%s2 + $0x1fc] sm:$0xf]
      %v760 = vld [vmem:[%s2 + $0x200] sm:$0xf]
      %v761 = vld [vmem:[%s2 + $0x204] sm:$0xf]
      %v762 = vld [vmem:[%s2 + $0x208] sm:$0xf]
      %v763 = vld [vmem:[%s2 + $0x20c] sm:$0xf]
      %v764 = vld [vmem:[%s2 + $0x210] sm:$0xf]
      %v765 = vld [vmem:[%s2 + $0x214] sm:$0xf]
      %v766 = vld [vmem:[%s2 + $0x218] sm:$0xf]
      %v767 = vld [vmem:[%s2 + $0x21c] sm:$0xf]
      %v768 = vld [vmem:[%s2 + $0x220] sm:$0xf]
      %v769 = vld [vmem:[%s2 + $0x224] sm:$0xf]
      %v770 = vld [vmem:[%s2 + $0x228] sm:$0xf]
      %v771 = vld [vmem:[%s2 + $0x22c] sm:$0xf]
      %v772 = vld [vmem:[%s2 + $0x230] sm:$0xf]
      %v773 = vld [vmem:[%s2 + $0x234] sm:$0xf]
      %v774 = vld [vmem:[%s2 + $0x238] sm:$0xf]
      %v775 = vld [vmem:[%s2 + $0x23c] sm:$0xf]
      %v920 = vunpack.c.l.b16 %v632
      %v921 = vunpack.c.l.b16 %v633
      %v922 = vunpack.c.l.b16 %v634
      %v923 = vunpack.c.l.b16 %v635
      %v924 = vunpack.c.l.b16 %v636
      %v925 = vunpack.c.l.b16 %v637
      %v926 = vunpack.c.l.b16 %v638
      %v927 = vunpack.c.l.b16 %v639
      %v928 = vunpack.c.l.b16 %v640
      %v929 = vunpack.c.l.b16 %v641
      %v930 = vunpack.c.l.b16 %v642
      %v931 = vunpack.c.l.b16 %v643
      %v932 = vunpack.c.l.b16 %v644
      %v933 = vunpack.c.l.b16 %v645
      %v934 = vunpack.c.l.b16 %v646
      %v935 = vunpack.c.l.b16 %v647
      %v936 = vunpack.c.l.b16 %v648
      %v937 = vunpack.c.l.b16 %v649
      %v938 = vunpack.c.l.b16 %v650
      %v939 = vunpack.c.l.b16 %v651
      %v940 = vunpack.c.l.b16 %v652
      %v941 = vunpack.c.l.b16 %v653
      %v942 = vunpack.c.l.b16 %v654
      %v943 = vunpack.c.l.b16 %v655
      %v944 = vunpack.c.l.b16 %v656
      %v945 = vunpack.c.l.b16 %v657
      %v946 = vunpack.c.l.b16 %v658
      %v947 = vunpack.c.l.b16 %v659
      %v948 = vunpack.c.l.b16 %v660
      %v949 = vunpack.c.l.b16 %v661
      %v950 = vunpack.c.l.b16 %v662
      %v951 = vunpack.c.l.b16 %v663
      %v952 = vunpack.c.l.b16 %v664
      %v953 = vunpack.c.l.b16 %v665
      %v954 = vunpack.c.l.b16 %v666
      %v955 = vunpack.c.l.b16 %v667
      %v956 = vunpack.c.l.b16 %v668
      %v957 = vunpack.c.l.b16 %v669
      %v958 = vunpack.c.l.b16 %v670
      %v959 = vunpack.c.l.b16 %v671
      %v960 = vunpack.c.l.b16 %v672
      %v961 = vunpack.c.l.b16 %v673
      %v962 = vunpack.c.l.b16 %v674
      %v963 = vunpack.c.l.b16 %v675
      %v964 = vunpack.c.l.b16 %v676
      %v965 = vunpack.c.l.b16 %v677
      %v966 = vunpack.c.l.b16 %v678
      %v967 = vunpack.c.l.b16 %v679
      %v968 = vunpack.c.l.b16 %v680
      %v969 = vunpack.c.l.b16 %v681
      %v970 = vunpack.c.l.b16 %v682
      %v971 = vunpack.c.l.b16 %v683
      %v972 = vunpack.c.l.b16 %v684
      %v973 = vunpack.c.l.b16 %v685
      %v974 = vunpack.c.l.b16 %v686
      %v975 = vunpack.c.l.b16 %v687
      %v976 = vunpack.c.l.b16 %v688
      %v977 = vunpack.c.l.b16 %v689
      %v978 = vunpack.c.l.b16 %v690
      %v979 = vunpack.c.l.b16 %v691
      %v980 = vunpack.c.l.b16 %v692
      %v981 = vunpack.c.l.b16 %v693
      %v982 = vunpack.c.l.b16 %v694
      %v983 = vunpack.c.l.b16 %v695
      %v984 = vunpack.c.l.b16 %v696
      %v985 = vunpack.c.l.b16 %v697
      %v986 = vunpack.c.l.b16 %v698
      %v987 = vunpack.c.l.b16 %v699
      %v988 = vunpack.c.l.b16 %v700
      %v989 = vunpack.c.l.b16 %v701
      %v990 = vunpack.c.l.b16 %v702
      %v991 = vunpack.c.l.b16 %v703
      %v992 = vunpack.c.l.b16 %v704
      %v993 = vunpack.c.l.b16 %v705
      %v994 = vunpack.c.l.b16 %v706
      %v995 = vunpack.c.l.b16 %v707
      %v996 = vunpack.c.l.b16 %v708
      %v997 = vunpack.c.l.b16 %v709
      %v998 = vunpack.c.l.b16 %v710
      %v999 = vunpack.c.l.b16 %v711
      %v1000 = vunpack.c.l.b16 %v712
      %v1001 = vunpack.c.l.b16 %v713
      %v1002 = vunpack.c.l.b16 %v714
      %v1003 = vunpack.c.l.b16 %v715
      %v1004 = vunpack.c.l.b16 %v716
      %v1005 = vunpack.c.l.b16 %v717
      %v1006 = vunpack.c.l.b16 %v718
      %v1007 = vunpack.c.l.b16 %v719
      %v1008 = vunpack.c.l.b16 %v720
      %v1009 = vunpack.c.l.b16 %v721
      %v1010 = vunpack.c.l.b16 %v722
      %v1011 = vunpack.c.l.b16 %v723
      %v1012 = vunpack.c.l.b16 %v724
      %v1013 = vunpack.c.l.b16 %v725
      %v1014 = vunpack.c.l.b16 %v726
      %v1015 = vunpack.c.l.b16 %v727
      %v1016 = vunpack.c.l.b16 %v728
      %v1017 = vunpack.c.l.b16 %v729
      %v1018 = vunpack.c.l.b16 %v730
      %v1019 = vunpack.c.l.b16 %v731
      %v1020 = vunpack.c.l.b16 %v732
      %v1021 = vunpack.c.l.b16 %v733
      %v1022 = vunpack.c.l.b16 %v734
      %v1023 = vunpack.c.l.b16 %v735
      %v1024 = vunpack.c.l.b16 %v736
      %v1025 = vunpack.c.l.b16 %v737
      %v1026 = vunpack.c.l.b16 %v738
      %v1027 = vunpack.c.l.b16 %v739
      %v1028 = vunpack.c.l.b16 %v740
      %v1029 = vunpack.c.l.b16 %v741
      %v1030 = vunpack.c.l.b16 %v742
      %v1031 = vunpack.c.l.b16 %v743
      %v1032 = vunpack.c.l.b16 %v744
      %v1033 = vunpack.c.l.b16 %v745
      %v1034 = vunpack.c.l.b16 %v746
      %v1035 = vunpack.c.l.b16 %v747
      %v1036 = vunpack.c.l.b16 %v748
      %v1037 = vunpack.c.l.b16 %v749
      %v1038 = vunpack.c.l.b16 %v750
      %v1039 = vunpack.c.l.b16 %v751
      %v1040 = vunpack.c.l.b16 %v752
      %v1041 = vunpack.c.l.b16 %v753
      %v1042 = vunpack.c.l.b16 %v754
      %v1043 = vunpack.c.l.b16 %v755
      %v1044 = vunpack.c.l.b16 %v756
      %v1045 = vunpack.c.l.b16 %v757
      %v1046 = vunpack.c.l.b16 %v758
      %v1047 = vunpack.c.l.b16 %v759
      %v1048 = vunpack.c.l.b16 %v760
      %v1049 = vunpack.c.l.b16 %v761
      %v1050 = vunpack.c.l.b16 %v762
      %v1051 = vunpack.c.l.b16 %v763
      %v1052 = vunpack.c.l.b16 %v764
      %v1053 = vunpack.c.l.b16 %v765
      %v1054 = vunpack.c.l.b16 %v766
      %v1055 = vunpack.c.l.b16 %v767
      %v1056 = vunpack.c.l.b16 %v768
      %v1057 = vunpack.c.l.b16 %v769
      %v1058 = vunpack.c.l.b16 %v770
      %v1059 = vunpack.c.l.b16 %v771
      %v1060 = vunpack.c.l.b16 %v772
      %v1061 = vunpack.c.l.b16 %v773
      %v1062 = vunpack.c.l.b16 %v774
      %v1063 = vunpack.c.l.b16 %v775
      %v1064 = vpack.c.b16 %v921, %v920
      %v1065 = vpack.c.b16 %v923, %v922
      %v1066 = vpack.c.b16 %v925, %v924
      %v1067 = vpack.c.b16 %v927, %v926
      %v1068 = vpack.c.b16 %v929, %v928
      %v1069 = vpack.c.b16 %v931, %v930
      %v1070 = vpack.c.b16 %v933, %v932
      %v1071 = vpack.c.b16 %v935, %v934
      %v1072 = vpack.c.b16 %v937, %v936
      %v1073 = vpack.c.b16 %v939, %v938
      %v1074 = vpack.c.b16 %v941, %v940
      %v1075 = vpack.c.b16 %v943, %v942
      %v1076 = vpack.c.b16 %v945, %v944
      %v1077 = vpack.c.b16 %v947, %v946
      %v1078 = vpack.c.b16 %v949, %v948
      %v1079 = vpack.c.b16 %v951, %v950
      %v1080 = vpack.c.b16 %v953, %v952
      %v1081 = vpack.c.b16 %v955, %v954
      %v1082 = vpack.c.b16 %v957, %v956
      %v1083 = vpack.c.b16 %v959, %v958
      %v1084 = vpack.c.b16 %v961, %v960
      %v1085 = vpack.c.b16 %v963, %v962
      %v1086 = vpack.c.b16 %v965, %v964
      %v1087 = vpack.c.b16 %v967, %v966
      %v1088 = vpack.c.b16 %v969, %v968
      %v1089 = vpack.c.b16 %v971, %v970
      %v1090 = vpack.c.b16 %v973, %v972
      %v1091 = vpack.c.b16 %v975, %v974
      %v1092 = vpack.c.b16 %v977, %v976
      %v1093 = vpack.c.b16 %v979, %v978
      %v1094 = vpack.c.b16 %v981, %v980
      %v1095 = vpack.c.b16 %v983, %v982
      %v1096 = vpack.c.b16 %v985, %v984
      %v1097 = vpack.c.b16 %v987, %v986
      %v1098 = vpack.c.b16 %v989, %v988
      %v1099 = vpack.c.b16 %v991, %v990
      %v1100 = vpack.c.b16 %v993, %v992
      %v1101 = vpack.c.b16 %v995, %v994
      %v1102 = vpack.c.b16 %v997, %v996
      %v1103 = vpack.c.b16 %v999, %v998
      %v1104 = vpack.c.b16 %v1001, %v1000
      %v1105 = vpack.c.b16 %v1003, %v1002
      %v1106 = vpack.c.b16 %v1005, %v1004
      %v1107 = vpack.c.b16 %v1007, %v1006
      %v1108 = vpack.c.b16 %v1009, %v1008
      %v1109 = vpack.c.b16 %v1011, %v1010
      %v1110 = vpack.c.b16 %v1013, %v1012
      %v1111 = vpack.c.b16 %v1015, %v1014
      %v1112 = vpack.c.b16 %v1017, %v1016
      %v1113 = vpack.c.b16 %v1019, %v1018
      %v1114 = vpack.c.b16 %v1021, %v1020
      %v1115 = vpack.c.b16 %v1023, %v1022
      %v1116 = vpack.c.b16 %v1025, %v1024
      %v1117 = vpack.c.b16 %v1027, %v1026
      %v1118 = vpack.c.b16 %v1029, %v1028
      %v1119 = vpack.c.b16 %v1031, %v1030
      %v1120 = vpack.c.b16 %v1033, %v1032
      %v1121 = vpack.c.b16 %v1035, %v1034
      %v1122 = vpack.c.b16 %v1037, %v1036
      %v1123 = vpack.c.b16 %v1039, %v1038
      %v1124 = vpack.c.b16 %v1041, %v1040
      %v1125 = vpack.c.b16 %v1043, %v1042
      %v1126 = vpack.c.b16 %v1045, %v1044
      %v1127 = vpack.c.b16 %v1047, %v1046
      %v1128 = vpack.c.b16 %v1049, %v1048
      %v1129 = vpack.c.b16 %v1051, %v1050
      %v1130 = vpack.c.b16 %v1053, %v1052
      %v1131 = vpack.c.b16 %v1055, %v1054
      %v1132 = vpack.c.b16 %v1057, %v1056
      %v1133 = vpack.c.b16 %v1059, %v1058
      %v1134 = vpack.c.b16 %v1061, %v1060
      %v1135 = vpack.c.b16 %v1063, %v1062
      %1208 = vmatprep.subr.bf16.mxu0 0
      %1209 = vmatpush1.bf16.msra.mxu0 %v1071
      %1210 = vmatprep.subr.bf16.mxu0 0
      %1211 = vmatpush1.bf16.msra.mxu0 %v1070
      %1212 = vmatprep.subr.bf16.mxu0 0
      %1213 = vmatpush1.bf16.msra.mxu0 %v1069
      %1214 = vmatprep.subr.bf16.mxu0 0
      %1215 = vmatpush1.bf16.msra.mxu0 %v1068
      %1216 = vmatprep.subr.bf16.mxu0 0
      %1217 = vmatpush1.bf16.msra.mxu0 %v1067
      %1218 = vmatprep.subr.bf16.mxu0 0
      %1219 = vmatpush1.bf16.msra.mxu0 %v1066
      %1220 = vmatprep.subr.bf16.mxu0 0
      %1221 = vmatpush1.bf16.msra.mxu0 %v1065
      %1222 = vmatprep.subr.bf16.mxu0 0
      %1223 = vmatpush1.bf16.msra.mxu0 %v1064
      %1224 = vmatprep.subr.bf16.mxu0 0
      %1225 = vmatpush2.bf16.msra.mxu0 %v1079
      %1226 = vmatprep.subr.bf16.mxu0 0
      %1227 = vmatpush2.bf16.msra.mxu0 %v1078
      %1228 = vmatprep.subr.bf16.mxu0 0
      %1229 = vmatpush2.bf16.msra.mxu0 %v1077
      %1230 = vmatprep.subr.bf16.mxu0 0
      %1231 = vmatpush2.bf16.msra.mxu0 %v1076
      %1232 = vmatprep.subr.bf16.mxu0 0
      %1233 = vmatpush2.bf16.msra.mxu0 %v1075
      %1234 = vmatprep.subr.bf16.mxu0 0
      %1235 = vmatpush2.bf16.msra.mxu0 %v1074
      %1236 = vmatprep.subr.bf16.mxu0 0
      %1237 = vmatpush2.bf16.msra.mxu0 %v1073
      %1238 = vmatprep.subr.bf16.mxu0 0
      %1239 = vmatpush2.bf16.msra.mxu0 %v1072
      %1240 = vmatprep.mubr.bf16.mxu0 %v454
      %1241 = vmatmul.mubr.bf16.gmra.mxu0 %v402
      %v1242 = vpop.f32.mrf.mxu0
      %v1243 = vadd.f32 0.0, %v1242
      %v1244 = vpop.f32.mrf.mxu0
      %v1245 = vpop.f32.mrf.mxu0
      %v1246 = vadd.f32 0.0, %v1245
      %v1247 = vpop.f32.mrf.mxu0
      %1248 = vmatprep.mubr.bf16.mxu0 %v466
      %1249 = vmatmul.mubr.bf16.gmra.mxu0 %v403
      %v1250 = vpop.f32.mrf.mxu0
      %v1251 = vadd.f32 0.0, %v1250
      %v1252 = vpop.f32.mrf.mxu0
      %v1253 = vpop.f32.mrf.mxu0
      %v1254 = vadd.f32 0.0, %v1253
      %v1255 = vpop.f32.mrf.mxu0
      %1256 = vmatprep.mubr.bf16.mxu0 %v478
      %1257 = vmatmul.mubr.bf16.gmra.mxu0 %v404
      %v1258 = vpop.f32.mrf.mxu0
      %v1259 = vadd.f32 0.0, %v1258
      %v1260 = vpop.f32.mrf.mxu0
      %v1261 = vpop.f32.mrf.mxu0
      %v1262 = vadd.f32 0.0, %v1261
      %v1263 = vpop.f32.mrf.mxu0
      %1264 = vmatprep.mubr.bf16.mxu0 %v490
      %1265 = vmatmul.mubr.bf16.gmra.mxu0 %v405
      %v1266 = vpop.f32.mrf.mxu0
      %v1267 = vadd.f32 0.0, %v1266
      %v1268 = vpop.f32.mrf.mxu0
      %v1269 = vpop.f32.mrf.mxu0
      %v1270 = vadd.f32 0.0, %v1269
      %v1271 = vpop.f32.mrf.mxu0
      %1272 = vmatprep.mubr.bf16.mxu0 %v502
      %1273 = vmatmul.mubr.bf16.gmra.mxu0 %v406
      %v1274 = vpop.f32.mrf.mxu0
      %v1275 = vadd.f32 0.0, %v1274
      %v1276 = vpop.f32.mrf.mxu0
      %v1277 = vpop.f32.mrf.mxu0
      %v1278 = vadd.f32 0.0, %v1277
      %v1279 = vpop.f32.mrf.mxu0
      %1280 = vmatprep.mubr.bf16.mxu0 %v514
      %1281 = vmatmul.mubr.bf16.gmra.mxu0 %v407
      %v1282 = vpop.f32.mrf.mxu0
      %v1283 = vadd.f32 0.0, %v1282
      %v1284 = vpop.f32.mrf.mxu0
      %v1285 = vpop.f32.mrf.mxu0
      %v1286 = vadd.f32 0.0, %v1285
      %v1287 = vpop.f32.mrf.mxu0
      %1288 = vmatprep.mubr.bf16.mxu0 %v526
      %1289 = vmatmul.mubr.bf16.gmra.mxu0 %v408
      %v1290 = vpop.f32.mrf.mxu0
      %v1291 = vadd.f32 0.0, %v1290
      %v1292 = vpop.f32.mrf.mxu0
      %v1293 = vpop.f32.mrf.mxu0
      %v1294 = vadd.f32 0.0, %v1293
      %v1295 = vpop.f32.mrf.mxu0
      %1296 = vmatprep.mubr.bf16.mxu0 %v538
      %1297 = vmatmul.mubr.bf16.gmra.mxu0 %v409
      %v1298 = vpop.f32.mrf.mxu0
      %v1299 = vadd.f32 0.0, %v1298
      %v1300 = vpop.f32.mrf.mxu0
      %v1301 = vpop.f32.mrf.mxu0
      %v1302 = vadd.f32 0.0, %v1301
      %v1303 = vpop.f32.mrf.mxu0
      %1304 = vdwg.mxu0
      %1305 = vmatprep.subr.bf16.mxu0 0
      %1306 = vmatpush1.bf16.msra.mxu0 %v1087
      %1307 = vmatprep.subr.bf16.mxu0 0
      %1308 = vmatpush1.bf16.msra.mxu0 %v1086
      %1309 = vmatprep.subr.bf16.mxu0 0
      %1310 = vmatpush1.bf16.msra.mxu0 %v1085
      %1311 = vmatprep.subr.bf16.mxu0 0
      %1312 = vmatpush1.bf16.msra.mxu0 %v1084
      %1313 = vmatprep.subr.bf16.mxu0 0
      %1314 = vmatpush1.bf16.msra.mxu0 %v1083
      %1315 = vmatprep.subr.bf16.mxu0 0
      %1316 = vmatpush1.bf16.msra.mxu0 %v1082
      %1317 = vmatprep.subr.bf16.mxu0 0
      %1318 = vmatpush1.bf16.msra.mxu0 %v1081
      %1319 = vmatprep.subr.bf16.mxu0 0
      %1320 = vmatpush1.bf16.msra.mxu0 %v1080
      %1321 = vmatprep.subr.bf16.mxu0 0
      %1322 = vmatpush2.bf16.msra.mxu0 %v1095
      %1323 = vmatprep.subr.bf16.mxu0 0
      %1324 = vmatpush2.bf16.msra.mxu0 %v1094
      %1325 = vmatprep.subr.bf16.mxu0 0
      %1326 = vmatpush2.bf16.msra.mxu0 %v1093
      %1327 = vmatprep.subr.bf16.mxu0 0
      %1328 = vmatpush2.bf16.msra.mxu0 %v1092
      %1329 = vmatprep.subr.bf16.mxu0 0
      %1330 = vmatpush2.bf16.msra.mxu0 %v1091
      %1331 = vmatprep.subr.bf16.mxu0 0
      %1332 = vmatpush2.bf16.msra.mxu0 %v1090
      %1333 = vmatprep.subr.bf16.mxu0 0
      %1334 = vmatpush2.bf16.msra.mxu0 %v1089
      %1335 = vmatprep.subr.bf16.mxu0 0
      %1336 = vmatpush2.bf16.msra.mxu0 %v1088
      %1337 = vmatprep.mubr.bf16.mxu0 %v403
      %1338 = vmatmul.mubr.bf16.gmra.mxu0 %v550
      %v1339 = vpop.f32.mrf.mxu0
      %v1340 = vadd.f32 %v1243, %v1339
      %v1341 = vpop.f32.mrf.mxu0
      %v1342 = vpop.f32.mrf.mxu0
      %v1343 = vadd.f32 %v1246, %v1342
      %v1344 = vpop.f32.mrf.mxu0
      %1345 = vmatprep.mubr.bf16.mxu0 %v404
      %1346 = vmatmul.mubr.bf16.gmra.mxu0 %v553
      %v1347 = vpop.f32.mrf.mxu0
      %v1348 = vadd.f32 %v1251, %v1347
      %v1349 = vpop.f32.mrf.mxu0
      %v1350 = vpop.f32.mrf.mxu0
      %v1351 = vadd.f32 %v1254, %v1350
      %v1352 = vpop.f32.mrf.mxu0
      %1353 = vmatprep.mubr.bf16.mxu0 %v405
      %1354 = vmatmul.mubr.bf16.gmra.mxu0 %v556
      %v1355 = vpop.f32.mrf.mxu0
      %v1356 = vadd.f32 %v1259, %v1355
      %v1357 = vpop.f32.mrf.mxu0
      %v1358 = vpop.f32.mrf.mxu0
      %v1359 = vadd.f32 %v1262, %v1358
      %v1360 = vpop.f32.mrf.mxu0
      %1361 = vmatprep.mubr.bf16.mxu0 %v406
      %1362 = vmatmul.mubr.bf16.gmra.mxu0 %v559
      %v1363 = vpop.f32.mrf.mxu0
      %v1364 = vadd.f32 %v1267, %v1363
      %v1365 = vpop.f32.mrf.mxu0
      %v1366 = vpop.f32.mrf.mxu0
      %v1367 = vadd.f32 %v1270, %v1366
      %v1368 = vpop.f32.mrf.mxu0
      %1369 = vmatprep.mubr.bf16.mxu0 %v407
      %1370 = vmatmul.mubr.bf16.gmra.mxu0 %v562
      %v1371 = vpop.f32.mrf.mxu0
      %v1372 = vadd.f32 %v1275, %v1371
      %v1373 = vpop.f32.mrf.mxu0
      %v1374 = vpop.f32.mrf.mxu0
      %v1375 = vadd.f32 %v1278, %v1374
      %v1376 = vpop.f32.mrf.mxu0
      %1377 = vmatprep.mubr.bf16.mxu0 %v408
      %1378 = vmatmul.mubr.bf16.gmra.mxu0 %v565
      %v1379 = vpop.f32.mrf.mxu0
      %v1380 = vadd.f32 %v1283, %v1379
      %v1381 = vpop.f32.mrf.mxu0
      %v1382 = vpop.f32.mrf.mxu0
      %v1383 = vadd.f32 %v1286, %v1382
      %v1384 = vpop.f32.mrf.mxu0
      %1385 = vmatprep.mubr.bf16.mxu0 %v409
      %1386 = vmatmul.mubr.bf16.gmra.mxu0 %v568
      %v1387 = vpop.f32.mrf.mxu0
      %v1388 = vadd.f32 %v1291, %v1387
      %v1389 = vpop.f32.mrf.mxu0
      %v1390 = vpop.f32.mrf.mxu0
      %v1391 = vadd.f32 %v1294, %v1390
      %v1392 = vpop.f32.mrf.mxu0
      %1393 = vmatprep.mubr.bf16.mxu0 %v584
      %1394 = vmatmul.mubr.bf16.gmra.mxu0 %v571
      %v1395 = vpop.f32.mrf.mxu0
      %v1396 = vadd.f32 %v1299, %v1395
      %v1397 = vpop.f32.mrf.mxu0
      %v1398 = vpop.f32.mrf.mxu0
      %v1399 = vadd.f32 %v1302, %v1398
      %v1400 = vpop.f32.mrf.mxu0
      %1401 = vdwg.mxu0
      %1402 = vmatprep.subr.bf16.mxu0 0
      %1403 = vmatpush1.bf16.msra.mxu0 %v1103
      %1404 = vmatprep.subr.bf16.mxu0 0
      %1405 = vmatpush1.bf16.msra.mxu0 %v1102
      %1406 = vmatprep.subr.bf16.mxu0 0
      %1407 = vmatpush1.bf16.msra.mxu0 %v1101
      %1408 = vmatprep.subr.bf16.mxu0 0
      %1409 = vmatpush1.bf16.msra.mxu0 %v1100
      %1410 = vmatprep.subr.bf16.mxu0 0
      %1411 = vmatpush1.bf16.msra.mxu0 %v1099
      %1412 = vmatprep.subr.bf16.mxu0 0
      %1413 = vmatpush1.bf16.msra.mxu0 %v1098
      %1414 = vmatprep.subr.bf16.mxu0 0
      %1415 = vmatpush1.bf16.msra.mxu0 %v1097
      %1416 = vmatprep.subr.bf16.mxu0 0
      %1417 = vmatpush1.bf16.msra.mxu0 %v1096
      %1418 = vmatprep.subr.bf16.mxu0 0
      %1419 = vmatpush2.bf16.msra.mxu0 %v1111
      %1420 = vmatprep.subr.bf16.mxu0 0
      %1421 = vmatpush2.bf16.msra.mxu0 %v1110
      %1422 = vmatprep.subr.bf16.mxu0 0
      %1423 = vmatpush2.bf16.msra.mxu0 %v1109
      %1424 = vmatprep.subr.bf16.mxu0 0
      %1425 = vmatpush2.bf16.msra.mxu0 %v1108
      %1426 = vmatprep.subr.bf16.mxu0 0
      %1427 = vmatpush2.bf16.msra.mxu0 %v1107
      %1428 = vmatprep.subr.bf16.mxu0 0
      %1429 = vmatpush2.bf16.msra.mxu0 %v1106
      %1430 = vmatprep.subr.bf16.mxu0 0
      %1431 = vmatpush2.bf16.msra.mxu0 %v1105
      %1432 = vmatprep.subr.bf16.mxu0 0
      %1433 = vmatpush2.bf16.msra.mxu0 %v1104
      %1434 = vmatprep.mubr.bf16.mxu0 %v553
      %1435 = vmatmul.mubr.bf16.gmra.mxu0 %v466
      %v1436 = vpop.f32.mrf.mxu0
      %v1437 = vadd.f32 %v1340, %v1436
      %v1438 = vpop.f32.mrf.mxu0
      %v1439 = vpop.f32.mrf.mxu0
      %v1440 = vadd.f32 %v1343, %v1439
      %v1441 = vpop.f32.mrf.mxu0
      %1442 = vmatprep.mubr.bf16.mxu0 %v556
      %1443 = vmatmul.mubr.bf16.gmra.mxu0 %v478
      %v1444 = vpop.f32.mrf.mxu0
      %v1445 = vadd.f32 %v1348, %v1444
      %v1446 = vpop.f32.mrf.mxu0
      %v1447 = vpop.f32.mrf.mxu0
      %v1448 = vadd.f32 %v1351, %v1447
      %v1449 = vpop.f32.mrf.mxu0
      %1450 = vmatprep.mubr.bf16.mxu0 %v559
      %1451 = vmatmul.mubr.bf16.gmra.mxu0 %v490
      %v1452 = vpop.f32.mrf.mxu0
      %v1453 = vadd.f32 %v1356, %v1452
      %v1454 = vpop.f32.mrf.mxu0
      %v1455 = vpop.f32.mrf.mxu0
      %v1456 = vadd.f32 %v1359, %v1455
      %v1457 = vpop.f32.mrf.mxu0
      %1458 = vmatprep.mubr.bf16.mxu0 %v562
      %1459 = vmatmul.mubr.bf16.gmra.mxu0 %v502
      %v1460 = vpop.f32.mrf.mxu0
      %v1461 = vadd.f32 %v1364, %v1460
      %v1462 = vpop.f32.mrf.mxu0
      %v1463 = vpop.f32.mrf.mxu0
      %v1464 = vadd.f32 %v1367, %v1463
      %v1465 = vpop.f32.mrf.mxu0
      %1466 = vmatprep.mubr.bf16.mxu0 %v565
      %1467 = vmatmul.mubr.bf16.gmra.mxu0 %v514
      %v1468 = vpop.f32.mrf.mxu0
      %v1469 = vadd.f32 %v1372, %v1468
      %v1470 = vpop.f32.mrf.mxu0
      %v1471 = vpop.f32.mrf.mxu0
      %v1472 = vadd.f32 %v1375, %v1471
      %v1473 = vpop.f32.mrf.mxu0
      %1474 = vmatprep.mubr.bf16.mxu0 %v568
      %1475 = vmatmul.mubr.bf16.gmra.mxu0 %v526
      %v1476 = vpop.f32.mrf.mxu0
      %v1477 = vadd.f32 %v1380, %v1476
      %v1478 = vpop.f32.mrf.mxu0
      %v1479 = vpop.f32.mrf.mxu0
      %v1480 = vadd.f32 %v1383, %v1479
      %v1481 = vpop.f32.mrf.mxu0
      %1482 = vmatprep.mubr.bf16.mxu0 %v571
      %1483 = vmatmul.mubr.bf16.gmra.mxu0 %v538
      %v1484 = vpop.f32.mrf.mxu0
      %v1485 = vadd.f32 %v1388, %v1484
      %v1486 = vpop.f32.mrf.mxu0
      %v1487 = vpop.f32.mrf.mxu0
      %v1488 = vadd.f32 %v1391, %v1487
      %v1489 = vpop.f32.mrf.mxu0
      %1490 = vmatprep.mubr.bf16.mxu0 %v604
      %1491 = vmatmul.mubr.bf16.gmra.mxu0 %v600
      %v1492 = vpop.f32.mrf.mxu0
      %v1493 = vadd.f32 %v1396, %v1492
      %v1494 = vpop.f32.mrf.mxu0
      %v1495 = vpop.f32.mrf.mxu0
      %v1496 = vadd.f32 %v1399, %v1495
      %v1497 = vpop.f32.mrf.mxu0
      %1498 = vdwg.mxu0
      %1499 = vmatprep.subr.bf16.mxu0 0
      %1500 = vmatpush1.bf16.msra.mxu0 %v1119
      %1501 = vmatprep.subr.bf16.mxu0 0
      %1502 = vmatpush1.bf16.msra.mxu0 %v1118
      %1503 = vmatprep.subr.bf16.mxu0 0
      %1504 = vmatpush1.bf16.msra.mxu0 %v1117
      %1505 = vmatprep.subr.bf16.mxu0 0
      %1506 = vmatpush1.bf16.msra.mxu0 %v1116
      %1507 = vmatprep.subr.bf16.mxu0 0
      %1508 = vmatpush1.bf16.msra.mxu0 %v1115
      %1509 = vmatprep.subr.bf16.mxu0 0
      %1510 = vmatpush1.bf16.msra.mxu0 %v1114
      %1511 = vmatprep.subr.bf16.mxu0 0
      %1512 = vmatpush1.bf16.msra.mxu0 %v1113
      %1513 = vmatprep.subr.bf16.mxu0 0
      %1514 = vmatpush1.bf16.msra.mxu0 %v1112
      %1515 = vmatprep.subr.bf16.mxu0 0
      %1516 = vmatpush2.bf16.msra.mxu0 %v1127
      %1517 = vmatprep.subr.bf16.mxu0 0
      %1518 = vmatpush2.bf16.msra.mxu0 %v1126
      %1519 = vmatprep.subr.bf16.mxu0 0
      %1520 = vmatpush2.bf16.msra.mxu0 %v1125
      %1521 = vmatprep.subr.bf16.mxu0 0
      %1522 = vmatpush2.bf16.msra.mxu0 %v1124
      %1523 = vmatprep.subr.bf16.mxu0 0
      %1524 = vmatpush2.bf16.msra.mxu0 %v1123
      %1525 = vmatprep.subr.bf16.mxu0 0
      %1526 = vmatpush2.bf16.msra.mxu0 %v1122
      %1527 = vmatprep.subr.bf16.mxu0 0
      %1528 = vmatpush2.bf16.msra.mxu0 %v1121
      %1529 = vmatprep.subr.bf16.mxu0 0
      %1530 = vmatpush2.bf16.msra.mxu0 %v1120
      %1531 = vmatprep.mubr.bf16.mxu0 %v478
      %1532 = vmatmul.mubr.bf16.gmra.mxu0 %v404
      %v1533 = vpop.f32.mrf.mxu0
      %v1534 = vadd.f32 %v1437, %v1533
      %v1535 = vpop.f32.mrf.mxu0
      %v1536 = vpop.f32.mrf.mxu0
      %v1537 = vadd.f32 %v1440, %v1536
      %v1538 = vpop.f32.mrf.mxu0
      %1539 = vmatprep.mubr.bf16.mxu0 %v490
      %1540 = vmatmul.mubr.bf16.gmra.mxu0 %v405
      %v1541 = vpop.f32.mrf.mxu0
      %v1542 = vadd.f32 %v1445, %v1541
      %v1543 = vpop.f32.mrf.mxu0
      %v1544 = vpop.f32.mrf.mxu0
      %v1545 = vadd.f32 %v1448, %v1544
      %v1546 = vpop.f32.mrf.mxu0
      %1547 = vmatprep.mubr.bf16.mxu0 %v502
      %1548 = vmatmul.mubr.bf16.gmra.mxu0 %v406
      %v1549 = vpop.f32.mrf.mxu0
      %v1550 = vadd.f32 %v1453, %v1549
      %v1551 = vpop.f32.mrf.mxu0
      %v1552 = vpop.f32.mrf.mxu0
      %v1553 = vadd.f32 %v1456, %v1552
      %v1554 = vpop.f32.mrf.mxu0
      %1555 = vmatprep.mubr.bf16.mxu0 %v514
      %1556 = vmatmul.mubr.bf16.gmra.mxu0 %v407
      %v1557 = vpop.f32.mrf.mxu0
      %v1558 = vadd.f32 %v1461, %v1557
      %v1559 = vpop.f32.mrf.mxu0
      %v1560 = vpop.f32.mrf.mxu0
      %v1561 = vadd.f32 %v1464, %v1560
      %v1562 = vpop.f32.mrf.mxu0
      %1563 = vmatprep.mubr.bf16.mxu0 %v526
      %1564 = vmatmul.mubr.bf16.gmra.mxu0 %v408
      %v1565 = vpop.f32.mrf.mxu0
      %v1566 = vadd.f32 %v1469, %v1565
      %v1567 = vpop.f32.mrf.mxu0
      %v1568 = vpop.f32.mrf.mxu0
      %v1569 = vadd.f32 %v1472, %v1568
      %v1570 = vpop.f32.mrf.mxu0
      %1571 = vmatprep.mubr.bf16.mxu0 %v538
      %1572 = vmatmul.mubr.bf16.gmra.mxu0 %v409
      %v1573 = vpop.f32.mrf.mxu0
      %v1574 = vadd.f32 %v1477, %v1573
      %v1575 = vpop.f32.mrf.mxu0
      %v1576 = vpop.f32.mrf.mxu0
      %v1577 = vadd.f32 %v1480, %v1576
      %v1578 = vpop.f32.mrf.mxu0
      %1579 = vmatprep.mubr.bf16.mxu0 %v600
      %1580 = vmatmul.mubr.bf16.gmra.mxu0 %v584
      %v1581 = vpop.f32.mrf.mxu0
      %v1582 = vadd.f32 %v1485, %v1581
      %v1583 = vpop.f32.mrf.mxu0
      %v1584 = vpop.f32.mrf.mxu0
      %v1585 = vadd.f32 %v1488, %v1584
      %v1586 = vpop.f32.mrf.mxu0
      %1587 = vmatprep.mubr.bf16.mxu0 %v626
      %1588 = vmatmul.mubr.bf16.gmra.mxu0 %v610
      %v1589 = vpop.f32.mrf.mxu0
      %v1590 = vadd.f32 %v1493, %v1589
      %v1591 = vpop.f32.mrf.mxu0
      %v1592 = vpop.f32.mrf.mxu0
      %v1593 = vadd.f32 %v1496, %v1592
      %v1594 = vpop.f32.mrf.mxu0
      %1595 = vdwg.mxu0
      %1596 = vmatprep.subr.bf16.mxu0 0
      %1597 = vmatpush1.bf16.msra.mxu0 %v1135
      %1598 = vmatprep.subr.bf16.mxu0 0
      %1599 = vmatpush1.bf16.msra.mxu0 %v1134
      %1600 = vmatprep.subr.bf16.mxu0 0
      %1601 = vmatpush1.bf16.msra.mxu0 %v1133
      %1602 = vmatprep.subr.bf16.mxu0 0
      %1603 = vmatpush1.bf16.msra.mxu0 %v1132
      %1604 = vmatprep.subr.bf16.mxu0 0
      %1605 = vmatpush1.bf16.msra.mxu0 %v1131
      %1606 = vmatprep.subr.bf16.mxu0 0
      %1607 = vmatpush1.bf16.msra.mxu0 %v1130
      %1608 = vmatprep.subr.bf16.mxu0 0
      %1609 = vmatpush1.bf16.msra.mxu0 %v1129
      %1610 = vmatprep.subr.bf16.mxu0 0
      %1611 = vmatpush1.bf16.msra.mxu0 %v1128
      %1612 = vmatprep.subr.bf16.mxu0 0
      %1613 = vmatpush2.bf16.msra.mxu0 0
      %1614 = vmatprep.subr.bf16.mxu0 0
      %1615 = vmatpush2.bf16.msra.mxu0 0
      %1616 = vmatprep.subr.bf16.mxu0 0
      %1617 = vmatpush2.bf16.msra.mxu0 0
      %1618 = vmatprep.subr.bf16.mxu0 0
      %1619 = vmatpush2.bf16.msra.mxu0 0
      %1620 = vmatprep.subr.bf16.mxu0 0
      %1621 = vmatpush2.bf16.msra.mxu0 0
      %1622 = vmatprep.subr.bf16.mxu0 0
      %1623 = vmatpush2.bf16.msra.mxu0 0
      %1624 = vmatprep.subr.bf16.mxu0 0
      %1625 = vmatpush2.bf16.msra.mxu0 0
      %1626 = vmatprep.subr.bf16.mxu0 0
      %1627 = vmatpush2.bf16.msra.mxu0 0
      %1628 = vmatprep.mubr.bf16.mxu0 0
      %1629 = vmatmul.mubr.bf16.gmra.mxu0 %v556
      %v1630 = vpop.f32.mrf.mxu0
      %v1631 = vadd.f32 %v1534, %v1630
      %v1632 = vpop.f32.mrf.mxu0
      %v1633 = vpop.f32.mrf.mxu0
      %v1634 = vadd.f32 %v1537, %v1633
      %v1635 = vpop.f32.mrf.mxu0
      %1636 = vmatprep.mubr.bf16.mxu0 0
      %1637 = vmatmul.mubr.bf16.gmra.mxu0 %v559
      %v1638 = vpop.f32.mrf.mxu0
      %v1639 = vadd.f32 %v1542, %v1638
      %v1640 = vpop.f32.mrf.mxu0
      %v1641 = vpop.f32.mrf.mxu0
      %v1642 = vadd.f32 %v1545, %v1641
      %v1643 = vpop.f32.mrf.mxu0
      %1644 = vmatprep.mubr.bf16.mxu0 0
      %1645 = vmatmul.mubr.bf16.gmra.mxu0 %v562
      %v1646 = vpop.f32.mrf.mxu0
      %v1647 = vadd.f32 %v1550, %v1646
      %v1648 = vpop.f32.mrf.mxu0
      %v1649 = vpop.f32.mrf.mxu0
      %v1650 = vadd.f32 %v1553, %v1649
      %v1651 = vpop.f32.mrf.mxu0
      %1652 = vmatprep.mubr.bf16.mxu0 0
      %1653 = vmatmul.mubr.bf16.gmra.mxu0 %v565
      %v1654 = vpop.f32.mrf.mxu0
      %v1655 = vadd.f32 %v1558, %v1654
      %v1656 = vpop.f32.mrf.mxu0
      %v1657 = vpop.f32.mrf.mxu0
      %v1658 = vadd.f32 %v1561, %v1657
      %v1659 = vpop.f32.mrf.mxu0
      %1660 = vmatprep.mubr.bf16.mxu0 0
      %1661 = vmatmul.mubr.bf16.gmra.mxu0 %v568
      %v1662 = vpop.f32.mrf.mxu0
      %v1663 = vadd.f32 %v1566, %v1662
      %v1664 = vpop.f32.mrf.mxu0
      %v1665 = vpop.f32.mrf.mxu0
      %v1666 = vadd.f32 %v1569, %v1665
      %v1667 = vpop.f32.mrf.mxu0
      %1668 = vmatprep.mubr.bf16.mxu0 0
      %1669 = vmatmul.mubr.bf16.gmra.mxu0 %v571
      %v1670 = vpop.f32.mrf.mxu0
      %v1671 = vadd.f32 %v1574, %v1670
      %v1672 = vpop.f32.mrf.mxu0
      %v1673 = vpop.f32.mrf.mxu0
      %v1674 = vadd.f32 %v1577, %v1673
      %v1675 = vpop.f32.mrf.mxu0
      %1676 = vmatprep.mubr.bf16.mxu0 0
      %1677 = vmatmul.mubr.bf16.gmra.mxu0 %v604
      %v1678 = vpop.f32.mrf.mxu0
      %v1679 = vadd.f32 %v1582, %v1678
      %v1680 = vpop.f32.mrf.mxu0
      %v1681 = vpop.f32.mrf.mxu0
      %v1682 = vadd.f32 %v1585, %v1681
      %v1683 = vpop.f32.mrf.mxu0
      %1684 = vmatprep.mubr.bf16.mxu0 0
      %1685 = vmatmul.mubr.bf16.gmra.mxu0 %v630
      %v1686 = vpop.f32.mrf.mxu0
      %v1687 = vadd.f32 %v1590, %v1686
      %v1688 = vpop.f32.mrf.mxu0
      %v1689 = vpop.f32.mrf.mxu0
      %v1690 = vadd.f32 %v1593, %v1689
      %v1691 = vpop.f32.mrf.mxu0
      %1692 = vdwg.mxu0
      %1693 = vst [vmem:[%s329] sm:$0xff] %v1631
      %1694 = vst [vmem:[%s329 + $0x8] sm:$0xff] %v1634
      %1695 = vst [vmem:[%s329 + $0x10] sm:$0xff] %v1639
      %1696 = vst [vmem:[%s329 + $0x18] sm:$0xff] %v1642
      %1697 = vst [vmem:[%s329 + $0x20] sm:$0xff] %v1647
      %1698 = vst [vmem:[%s329 + $0x28] sm:$0xff] %v1650
      %1699 = vst [vmem:[%s329 + $0x30] sm:$0xff] %v1655
      %1700 = vst [vmem:[%s329 + $0x38] sm:$0xff] %v1658
      %1701 = vst [vmem:[%s329 + $0x40] sm:$0xff] %v1663
      %1702 = vst [vmem:[%s329 + $0x48] sm:$0xff] %v1666
      %1703 = vst [vmem:[%s329 + $0x50] sm:$0xff] %v1671
      %1704 = vst [vmem:[%s329 + $0x58] sm:$0xff] %v1674
      %1705 = vst [vmem:[%s329 + $0x60] sm:$0xff] %v1679
      %1706 = vst [vmem:[%s329 + $0x68] sm:$0xff] %v1682
      %1707 = vst [vmem:[%s329 + $0x70] sm:$0xff] %v1687
      %1708 = vst [vmem:[%s329 + $0x78] sm:$0xff] %v1690
      %v1709 = vadd.f32 %v1631, %v1634
      %v1710 = vadd.f32 %v1709, %v1639
      %v1711 = vadd.f32 %v1710, %v1642
      %v1712 = vadd.f32 %v1711, %v1647
      %v1713 = vadd.f32 %v1712, %v1650
      %v1714 = vadd.f32 %v1713, %v1655
      %v1715 = vadd.f32 %v1714, %v1658
      %v1716 = vadd.f32 %v1715, %v1663
      %v1717 = vadd.f32 %v1716, %v1666
      %v1718 = vadd.f32 %v1717, %v1671
      %v1719 = vadd.f32 %v1718, %v1674
      %v1720 = vadd.f32 %v1719, %v1679
      %v1721 = vadd.f32 %v1720, %v1682
      %v1722 = vadd.f32 %v1721, %v1687
      %v1723 = vadd.f32 %v1722, %v1690
      %v1724 = vrot.slane %v1723, 4
      %v1725 = vadd.f32 %v1723, %v1724
      %v1726 = vrot.slane %v1725, 2
      %v1727 = vadd.f32 %v1725, %v1726
      %v1728 = vrot.slane %v1727, 1
      %v1729 = vadd.f32 %v1727, %v1728
      %v1730 = vmul.f32 %v1631, %v1631
      %v1731 = vmul.f32 %v1634, %v1634
      %v1732 = vmul.f32 %v1639, %v1639
      %v1733 = vmul.f32 %v1642, %v1642
      %v1734 = vmul.f32 %v1647, %v1647
      %v1735 = vmul.f32 %v1650, %v1650
      %v1736 = vmul.f32 %v1655, %v1655
      %v1737 = vmul.f32 %v1658, %v1658
      %v1738 = vmul.f32 %v1663, %v1663
      %v1739 = vmul.f32 %v1666, %v1666
      %v1740 = vmul.f32 %v1671, %v1671
      %v1741 = vmul.f32 %v1674, %v1674
      %v1742 = vmul.f32 %v1679, %v1679
      %v1743 = vmul.f32 %v1682, %v1682
      %v1744 = vmul.f32 %v1687, %v1687
      %v1745 = vmul.f32 %v1690, %v1690
      %v1746 = vadd.f32 %v1730, %v1731
      %v1747 = vadd.f32 %v1746, %v1732
      %v1748 = vadd.f32 %v1747, %v1733
      %v1749 = vadd.f32 %v1748, %v1734
      %v1750 = vadd.f32 %v1749, %v1735
      %v1751 = vadd.f32 %v1750, %v1736
      %v1752 = vadd.f32 %v1751, %v1737
      %v1753 = vadd.f32 %v1752, %v1738
      %v1754 = vadd.f32 %v1753, %v1739
      %v1755 = vadd.f32 %v1754, %v1740
      %v1756 = vadd.f32 %v1755, %v1741
      %v1757 = vadd.f32 %v1756, %v1742
      %v1758 = vadd.f32 %v1757, %v1743
      %v1759 = vadd.f32 %v1758, %v1744
      %v1760 = vadd.f32 %v1759, %v1745
      %v1761 = vrot.slane %v1760, 4
      %v1762 = vadd.f32 %v1760, %v1761
      %v1763 = vrot.slane %v1762, 2
      %v1764 = vadd.f32 %v1762, %v1763
      %v1765 = vrot.slane %v1764, 1
      %v1766 = vadd.f32 %v1764, %v1765
      %vm1767 = vcmask 1040384
      %v1768 = vsel %vm1767, %v1729, %v1766
      %1769 = vst [vmem:[%s338] sm:$0x3] %v1768
      %s1770 = smul.u32 16, %s21
      %p1771 = scmp.lt.s32.totalorder %s20, 1
      %s1772 = scalar_select %p1771, %s20, 1
      %p1773 = scmp.lt.s32.totalorder %s1770, 31
      %s1774 = scalar_select %p1773, %s1770, 31
      %s1775 = smul.addr %s1772, 32
      %s1776 = sadd.s32 %s1774, %s1775
      %s1777 = smul.addr %s1776, 8
      %s1778 = scalar_lea.vmem %s3, %s1777
      %p1779 = scmp.lt.s32.totalorder %s20, 1
      %s1780 = scalar_select %p1779, %s20, 1
      %p1781 = scmp.lt.s32.totalorder %s21, 1
      %s1782 = scalar_select %p1781, %s21, 1
      %s1783 = smul.addr %s1780, 2
      %s1784 = sadd.s32 %s1782, %s1783
      %s1785 = smul.addr %s1784, 2
      %s1786 = scalar_lea.vmem %s4, %s1785
      // Predicated region
      $region33: #{double_conv_forward.4} parent=31 // pred_check
        %p1787 = pneg %p129
      $region34: #{double_conv_forward.4} parent=31 // pred_check_branch
        %1789 = sbr.rel (%p1787) target = $region36
      $region35: #{double_conv_forward.4} parent=31 // pred_region
        %s1790 = smul.u32 16, %s21
      $region36: #{double_conv_forward.4} parent=31 // pred_fallthru
        _
      // Predicated region
      $region37: #{double_conv_forward.4} parent=31 // pred_check
        %p1791 = pneg %p157
      $region38: #{double_conv_forward.4} parent=31 // pred_check_branch
        %1793 = sbr.rel (%p1791) target = $region40
      $region39: #{double_conv_forward.4} parent=31 // pred_region
        _
      $region40: #{double_conv_forward.4} parent=31 // pred_fallthru
        _
    $region32: #{double_conv_forward.4} parent=5 // pred_fallthru
      _
    %p1794 = scmp.le.s32.totalorder 2, %s11
    // Predicated region
    $region41: #{double_conv_forward.4} parent=5 // pred_check
      %p1795 = pneg %p1794
    $region42: #{double_conv_forward.4} parent=5 // pred_check_branch
      %1797 = sbr.rel (%p1795) target = $region44
    $region43: #{double_conv_forward.4} parent=5 // pred_region
      %s1798 = ssub.s32 %s11, 2
      // Predicated region
      $region45: #{double_conv_forward.4} parent=43 // pred_check
        %p1799 = pneg %p135
      $region46: #{double_conv_forward.4} parent=43 // pred_check_branch
        %1801 = sbr.rel (%p1799) target = $region48
      $region47: #{double_conv_forward.4} parent=43 // pred_region
        %s1802 = smul.u32 16, %s23
        %p1803 = scmp.lt.s32.totalorder %s22, 1
        %s1804 = scalar_select %p1803, %s22, 1
        %p1805 = scmp.lt.s32.totalorder %s1802, 31
        %s1806 = scalar_select %p1805, %s1802, 31
        %s1807 = smul.addr %s1804, 32
        %s1808 = sadd.s32 %s1806, %s1807
        %s1809 = smul.addr %s1808, 8
        %s1810 = scalar_lea.vmem %s3, %s1809
      $region48: #{double_conv_forward.4} parent=43 // pred_fallthru
        _
      // Predicated region
      $region49: #{double_conv_forward.4} parent=43 // pred_check
        %p1811 = pneg %p163
      $region50: #{double_conv_forward.4} parent=43 // pred_check_branch
        %1813 = sbr.rel (%p1811) target = $region52
      $region51: #{double_conv_forward.4} parent=43 // pred_region
        %p1814 = scmp.lt.s32.totalorder %s22, 1
        %s1815 = scalar_select %p1814, %s22, 1
        %p1816 = scmp.lt.s32.totalorder %s23, 1
        %s1817 = scalar_select %p1816, %s23, 1
        %s1818 = smul.addr %s1815, 2
        %s1819 = sadd.s32 %s1817, %s1818
        %s1820 = smul.addr %s1819, 2
        %s1821 = scalar_lea.vmem %s4, %s1820
      $region52: #{double_conv_forward.4} parent=43 // pred_fallthru
        _
    $region44: #{double_conv_forward.4} parent=5 // pred_fallthru
      _
  $region6: #{double_conv_forward.4} parent=0 // loop_footer
    %s15 = sadd.s32 1, %s11
  $region7: #{double_conv_forward.4} parent=0 // loop_footer_branch
    %10 = sbr.rel target = $region3
  $region8: #{double_conv_forward.4} parent=0 // loop_exit
    _

</llo_original>
